<compile_context>
chip_gen: v7x
topology: tpu7x:2x2x1
jax: 0.10.0
libtpu: 0.0.40
codegen_flags: <defaults>
</compile_context>

<pallas_src>
import math
import functools

import jax
import jax.numpy as jnp
from jax.experimental import pallas as pl
from jax.experimental.pallas import tpu as pltpu


def _round_up(a, m):
    return ((a + m - 1) // m) * m


def _sinusoidal_kernel(x_ref, o_ref, *, min_deg, max_deg, use_identity, x_dim):
    # x_ref: (x_dim, TILE_N)   o_ref: (latent_dim, TILE_N); samples on lanes.
    x = x_ref[...].astype(jnp.float32)

    row = 0
    if use_identity:
        o_ref[0:x_dim, :] = x.astype(o_ref.dtype)
        row = x_dim

    num_degs = max_deg - min_deg
    half_pi = 0.5 * math.pi
    cos_base = row + num_degs * x_dim
    for d in range(num_degs):
        scale = float(2.0 ** (min_deg + d))   # immediate scale -> one VALU mul
        xb = x * scale
        sin_off = row + d * x_dim
        cos_off = cos_base + d * x_dim
        # cos(z) == sin(z + pi/2); identical formula to the PyTorch module's
        # sin(cat([xb, xb + pi/2])) so results match the reference closely.
        o_ref[sin_off:sin_off + x_dim, :] = jnp.sin(xb).astype(o_ref.dtype)
        o_ref[cos_off:cos_off + x_dim, :] = jnp.sin(xb + half_pi).astype(o_ref.dtype)


def sinusoidal_encoder(x, *, min_deg, max_deg, use_identity=True, tile_n=4096):
    """x: [..., x_dim] -> [..., latent_dim]. Matches PyTorch SinusoidalEncoder.forward."""
    x_dim = x.shape[-1]
    num_degs = max_deg - min_deg
    if num_degs == 0:
        # Module returns x unchanged in this case.
        return x

    latent_dim = (int(use_identity) + 2 * num_degs) * x_dim
    lead_shape = x.shape[:-1]
    n = 1
    for s in lead_shape:
        n *= s
    x2d = x.reshape(n, x_dim)

    # Lane-axis tile: multiple of 128, VMEM-bounded, never larger than needed.
    bytes_per_col = (latent_dim + x_dim) * 4 * 2   # f32, double-buffered in+out
    vmem_budget = 8 * 1024 * 1024
    tile_cap = max(vmem_budget // bytes_per_col, 128)
    tile = min(tile_n, tile_cap)
    tile = max(128, (tile // 128) * 128)
    tile = min(tile, _round_up(n, 128))
    n_pad = _round_up(n, tile)

    # Transposed, lane-dense layout: (x_dim, N). Pad only the tiny transposed input.
    xt = x2d.T
    if n_pad != n:
        xt = jnp.pad(xt, ((0, 0), (0, n_pad - n)))

    kernel = functools.partial(
        _sinusoidal_kernel,
        min_deg=min_deg,
        max_deg=max_deg,
        use_identity=use_identity,
        x_dim=x_dim,
    )

    out_t = pl.pallas_call(
        kernel,
        out_shape=jax.ShapeDtypeStruct((latent_dim, n_pad), x.dtype),
        grid_spec=pltpu.PrefetchScalarGridSpec(
            num_scalar_prefetch=0,
            grid=(n_pad // tile,),
            in_specs=[pl.BlockSpec((x_dim, tile), lambda i: (0, i))],
            out_specs=pl.BlockSpec((latent_dim, tile), lambda i: (0, i)),
        ),
        compiler_params=pltpu.CompilerParams(
            dimension_semantics=("parallel",),
        ),
    )(xt)

    out2d = out_t[:, :n].T
    return out2d.reshape(*lead_shape, latent_dim)


def _reference(x, min_deg, max_deg, use_identity=True):
    """Pure-JAX reference mirroring the PyTorch module."""
    if max_deg == min_deg:
        return x
    scales = jnp.array([2.0 ** i for i in range(min_deg, max_deg)], dtype=x.dtype)
    xb = (x[..., None, :] * scales[:, None]).reshape(
        *x.shape[:-1], (max_deg - min_deg) * x.shape[-1]
    )
    latent = jnp.sin(jnp.concatenate([xb, xb + 0.5 * math.pi], axis=-1))
    if use_identity:
        latent = jnp.concatenate([x, latent], axis=-1)
    return latent


if __name__ == "__main__":
    # Small config: x_dim=4, degrees 0..4, identity on -> latent_dim = (1 + 8)*4 = 36.
    x_dim = 4
    min_deg = 0
    max_deg = 4
    use_identity = True

    key = jax.random.PRNGKey(0)
    x = jax.random.normal(key, (2, 16, 16, x_dim), dtype=jnp.float32)  # [..., x_dim]

    out = sinusoidal_encoder(
        x, min_deg=min_deg, max_deg=max_deg, use_identity=use_identity
    )
    out = jax.block_until_ready(out)

    ref = _reference(x, min_deg, max_deg, use_identity)
    expected_latent = (int(use_identity) + 2 * (max_deg - min_deg)) * x_dim
    assert out.shape == (2, 16, 16, expected_latent), out.shape
    assert jnp.allclose(out, ref, atol=1e-5, rtol=1e-5), "mismatch vs reference"

    print("KERNEL_OK")
</pallas_src>

<mosaic_0001>
module attributes {stable_mosaic.version = 11 : i64} {
  func.func @_sinusoidal_kernel(%arg0: i32, %arg1: memref<4x512xf32, #tpu.memory_space<vmem>>, %arg2: memref<36x512xf32, #tpu.memory_space<vmem>>) attributes {dimension_semantics = [#tpu.dimension_semantics<parallel>], iteration_bounds = array<i64: 1>, scalar_prefetch = 0 : i64, scratch_operands = 0 : i64, tpu.core_type = #tpu.core_type<tc>, window_params = [{transform_indices = @transform_0, window_bounds = array<i64: 4, 512>}, {transform_indices = @transform_1, window_bounds = array<i64: 36, 512>}]} {
    %c0 = arith.constant 0 : index
    %c0_0 = arith.constant 0 : index
    %0 = vector.load %arg1[%c0, %c0_0] : memref<4x512xf32, #tpu.memory_space<vmem>>, vector<4x512xf32>
    %c0_1 = arith.constant 0 : index
    %c0_2 = arith.constant 0 : index
    %1 = vector.load %arg2[%c0_1, %c0_2] : memref<36x512xf32, #tpu.memory_space<vmem>>, vector<4x512xf32>
    tpu.vector_store %arg2[%c0_1, %c0_2], %0 {strides = array<i32>} : memref<36x512xf32, #tpu.memory_space<vmem>>, vector<4x512xf32>,
    %cst = arith.constant 1.000000e+00 : f32
    %2 = vector.broadcast %cst : f32 to vector<4x512xf32>
    %3 = arith.mulf %0, %2 : vector<4x512xf32>
    %4 = math.sin %3 : vector<4x512xf32>
    %c4 = arith.constant 4 : index
    %c0_3 = arith.constant 0 : index
    %5 = vector.load %arg2[%c4, %c0_3] : memref<36x512xf32, #tpu.memory_space<vmem>>, vector<4x512xf32>
    tpu.vector_store %arg2[%c4, %c0_3], %4 {strides = array<i32>} : memref<36x512xf32, #tpu.memory_space<vmem>>, vector<4x512xf32>,
    %cst_4 = arith.constant 1.57079637 : f32
    %6 = vector.broadcast %cst_4 : f32 to vector<4x512xf32>
    %7 = arith.addf %3, %6 : vector<4x512xf32>
    %8 = math.sin %7 : vector<4x512xf32>
    %c20 = arith.constant 20 : index
    %c0_5 = arith.constant 0 : index
    %9 = vector.load %arg2[%c20, %c0_5] : memref<36x512xf32, #tpu.memory_space<vmem>>, vector<4x512xf32>
    tpu.vector_store %arg2[%c20, %c0_5], %8 {strides = array<i32>} : memref<36x512xf32, #tpu.memory_space<vmem>>, vector<4x512xf32>,
    %cst_6 = arith.constant 2.000000e+00 : f32
    %10 = vector.broadcast %cst_6 : f32 to vector<4x512xf32>
    %11 = arith.mulf %0, %10 : vector<4x512xf32>
    %12 = math.sin %11 : vector<4x512xf32>
    %c8 = arith.constant 8 : index
    %c0_7 = arith.constant 0 : index
    %13 = vector.load %arg2[%c8, %c0_7] : memref<36x512xf32, #tpu.memory_space<vmem>>, vector<4x512xf32>
    tpu.vector_store %arg2[%c8, %c0_7], %12 {strides = array<i32>} : memref<36x512xf32, #tpu.memory_space<vmem>>, vector<4x512xf32>,
    %cst_8 = arith.constant 1.57079637 : f32
    %14 = vector.broadcast %cst_8 : f32 to vector<4x512xf32>
    %15 = arith.addf %11, %14 : vector<4x512xf32>
    %16 = math.sin %15 : vector<4x512xf32>
    %c24 = arith.constant 24 : index
    %c0_9 = arith.constant 0 : index
    %17 = vector.load %arg2[%c24, %c0_9] : memref<36x512xf32, #tpu.memory_space<vmem>>, vector<4x512xf32>
    tpu.vector_store %arg2[%c24, %c0_9], %16 {strides = array<i32>} : memref<36x512xf32, #tpu.memory_space<vmem>>, vector<4x512xf32>,
    %cst_10 = arith.constant 4.000000e+00 : f32
    %18 = vector.broadcast %cst_10 : f32 to vector<4x512xf32>
    %19 = arith.mulf %0, %18 : vector<4x512xf32>
    %20 = math.sin %19 : vector<4x512xf32>
    %c12 = arith.constant 12 : index
    %c0_11 = arith.constant 0 : index
    %21 = vector.load %arg2[%c12, %c0_11] : memref<36x512xf32, #tpu.memory_space<vmem>>, vector<4x512xf32>
    tpu.vector_store %arg2[%c12, %c0_11], %20 {strides = array<i32>} : memref<36x512xf32, #tpu.memory_space<vmem>>, vector<4x512xf32>,
    %cst_12 = arith.constant 1.57079637 : f32
    %22 = vector.broadcast %cst_12 : f32 to vector<4x512xf32>
    %23 = arith.addf %19, %22 : vector<4x512xf32>
    %24 = math.sin %23 : vector<4x512xf32>
    %c28 = arith.constant 28 : index
    %c0_13 = arith.constant 0 : index
    %25 = vector.load %arg2[%c28, %c0_13] : memref<36x512xf32, #tpu.memory_space<vmem>>, vector<4x512xf32>
    tpu.vector_store %arg2[%c28, %c0_13], %24 {strides = array<i32>} : memref<36x512xf32, #tpu.memory_space<vmem>>, vector<4x512xf32>,
    %cst_14 = arith.constant 8.000000e+00 : f32
    %26 = vector.broadcast %cst_14 : f32 to vector<4x512xf32>
    %27 = arith.mulf %0, %26 : vector<4x512xf32>
    %28 = math.sin %27 : vector<4x512xf32>
    %c16 = arith.constant 16 : index
    %c0_15 = arith.constant 0 : index
    %29 = vector.load %arg2[%c16, %c0_15] : memref<36x512xf32, #tpu.memory_space<vmem>>, vector<4x512xf32>
    tpu.vector_store %arg2[%c16, %c0_15], %28 {strides = array<i32>} : memref<36x512xf32, #tpu.memory_space<vmem>>, vector<4x512xf32>,
    %cst_16 = arith.constant 1.57079637 : f32
    %30 = vector.broadcast %cst_16 : f32 to vector<4x512xf32>
    %31 = arith.addf %27, %30 : vector<4x512xf32>
    %32 = math.sin %31 : vector<4x512xf32>
    %c32 = arith.constant 32 : index
    %c0_17 = arith.constant 0 : index
    %33 = vector.load %arg2[%c32, %c0_17] : memref<36x512xf32, #tpu.memory_space<vmem>>, vector<4x512xf32>
    tpu.vector_store %arg2[%c32, %c0_17], %32 {strides = array<i32>} : memref<36x512xf32, #tpu.memory_space<vmem>>, vector<4x512xf32>,
    return
  }
  func.func @transform_0(%arg0: i32) -> (i32, i32) {
    %c0_i32 = arith.constant 0 : i32
    %c0_i32_0 = arith.constant 0 : i32
    return %c0_i32, %arg0 : i32, i32
  }
  func.func @transform_1(%arg0: i32) -> (i32, i32) {
    %c0_i32 = arith.constant 0 : i32
    %c0_i32_0 = arith.constant 0 : i32
    return %c0_i32, %arg0 : i32, i32
  }
}

</mosaic_0001>

<llo_original>
// kernel: tpu_custom_call.1
$region0: #{tpu_custom_call.1}
  #allocation0 [shape = 'u32[]', space=smem, size = 0x4, offset = 0x4, fixed_abs, tag = 'smem constant byte address 0x4 - core index']
  #allocation1 [shape = 'u32[144,128]{1,0:T(1,128)}', space=vmem, size = 0x12000, scoped, tag = 'internal scratch']
  %s0 = inlined_call_operand.hbm [shape: f32[4,512], index: 0, kind: input, shape index: {}]
  %s1 = inlined_call_operand.hbm [shape: f32[36,512], index: 1, kind: output, shape index: {}]
  %s2 = sld [smem:[#allocation0]]
  $region18: #{tpu_custom_call.1} parent=0
    _
  %s4 = ssub.s32 1, %s2
  %s5 = scalar_select 0, %s4, %s2
  $region1: #{tpu_custom_call.1} parent=0
    #allocation2 [shape = 'u8[8192]{0}', space=vmem, size = 0x2000, scoped, tag = 'input window, operand 0, single buffered']
    #allocation3 [shape = 's32[1]{0}', space=sflag, size = 0x4, scoped, tag = 'scoped memory for tpu_custom_call.1']
    #allocation4 [shape = 's32[1]{0}', space=sflag, size = 0x4, scoped, tag = 'scoped memory for tpu_custom_call.1']
    #allocation5 [shape = 'u8[81920]{0}', space=vmem, size = 0x14000, scoped, tag = 'output window, operand 0, single buffered']
    %6 = vsyncpa [#allocation3], 0
    %7 = vsyncpa [#allocation4], 0
    // Predicated region
    $region2: #{tpu_custom_call.1} parent=1 // pred_check
      _
    $region3: #{tpu_custom_call.1} parent=1 // pred_check_branch
      %9 = sbr.rel (0) target = $region5
    $region4: #{tpu_custom_call.1} parent=1 // pred_region
      %s11 = ssub.s32 256, 256
      %12 = vsyncadd [#allocation3], %s11
      %s14 = sshll.u32 [#allocation2], 4
      %s15 = int_to_ptr.vmem [resolvable:$true] %s14
      %17 = dma.hbm_to_vmem [thread:$0]  %s0, 256, %s15, [#allocation3]
    $region5: #{tpu_custom_call.1} parent=1 // pred_fallthru
      _
    // Predicated region
    $region6: #{tpu_custom_call.1} parent=1 // pred_check
      _
    $region7: #{tpu_custom_call.1} parent=1 // pred_check_branch
      %19 = sbr.rel (0) target = $region9
    $region8: #{tpu_custom_call.1} parent=1 // pred_region
      %20 = dma.done [#allocation3], 256
    $region9: #{tpu_custom_call.1} parent=1 // pred_fallthru
      _
    %v21 = vld [vmem:[#allocation2] sm:$0xff]
    %v22 = vld [vmem:[#allocation2 + $0x8] sm:$0xff]
    %v25 = vcombine.high %v21, %v21
    %v26 = vcombine.high %v22, %v22
    %29 = vst [vmem:[#allocation5] sm:$0xf] %v21
    %30 = vst [vmem:[#allocation5 + $0x8] sm:$0xf] %v25
    %31 = vst [vmem:[#allocation5 + $0x10] sm:$0xf] %v22
    %32 = vst [vmem:[#allocation5 + $0x18] sm:$0xf] %v26
    %v33 = vand.u32 2147483647, %v21
    %vm34 = vcmp.le.f32.partialorder %v33, 0.7853982
    %vm35 = vcmp.lt.s32.totalorder %v21, 0
    %v36 = vand.u32 %v21, 2139095040
    %v37 = vshrl.u32 %v36, 23
    %v38 = vsub.s32 %v37, 127
    %v39 = vand.u32 2147483647, %v21
    %v40 = vand.u32 %v39, 8388607
    %v41 = vor.u32 %v40, 8388608
    %v42 = vsub.s32 0, %v41
    %v43 = vadd.s32 %v38, 1
    %vm44 = vcmp.gt.s32.totalorder %v43, 0
    %v45 = vsel %vm44, %v43, 0
    %v46 = vshrl.u32 %v45, 5
    %v47 = vand.u32 %v45, 31
    %v48 = vsub.s32 32, %v47
    %v49 = vshrl.u32 683565275, %v48
    %v50 = vshll.u32 683565275, %v47
    %v51 = vshrl.u32 2475754826, %v48
    %v52 = vor.u32 %v50, %v51
    %v53 = vshll.u32 2475754826, %v47
    %v54 = vshrl.u32 2131351028, %v48
    %v55 = vor.u32 %v53, %v54
    %v56 = vshll.u32 2131351028, %v47
    %v57 = vshrl.u32 2102212464, %v48
    %v58 = vor.u32 %v56, %v57
    %v59 = vshll.u32 2102212464, %v47
    %v60 = vshrl.u32 920167782, %v48
    %v61 = vor.u32 %v59, %v60
    %v62 = vshll.u32 920167782, %v47
    %v63 = vshrl.u32 1326507024, %v48
    %v64 = vor.u32 %v62, %v63
    %vm65 = vcmp.lt.s32.totalorder %v46, 1
    %vm66 = vcmp.lt.s32.totalorder %v46, 2
    %vm67 = vcmp.lt.s32.totalorder %v46, 3
    %vm68 = vcmp.lt.s32.totalorder %v46, 4
    %v69 = vsel %vm65, %v49, %v52
    %v70 = vsel %vm68, %v58, 2102212464
    %v71 = vsel %vm67, %v55, %v70
    %v72 = vsel %vm66, %v69, %v71
    %v73 = vsel %vm65, %v52, %v55
    %v74 = vsel %vm68, %v61, 920167782
    %v75 = vsel %vm67, %v58, %v74
    %v76 = vsel %vm66, %v73, %v75
    %v77 = vsel %vm65, %v55, %v58
    %v78 = vsel %vm68, %v64, 1326507024
    %v79 = vsel %vm67, %v61, %v78
    %v80 = vsel %vm66, %v77, %v79
    %v81 = vshll.u32 %v41, 8
    %v82 = vmul.u32.u64.compose %v81, %v80
    %v83 = vextract.low.u32 %v82
    %v84 = vextract.high.u32 %v82
    %v85 = vmul.u32.u64.compose %v81, %v76
    %v86 = vextract.low.u32 %v85
    %v87 = vextract.high.u32 %v85
    %v88 = vmul.u32 %v81, %v72
    %v89 = vadd.s32 %v84, %v86
    %vm90 = vc.u32 %v84, %v86
    %v91 = vadd.s32 %v87, 1
    %v92 = vsel %vm90, %v91, %v87
    %v93 = vadd.s32 %v88, %v92
    %v94 = vadd.s32 %v93, 536870912
    %v95 = vshrl.u32 %v94, 30
    %v96 = vshll.u32 %v95, 30
    %v97 = vsub.s32 %v93, %v96
    %vm98 = vcmp.lt.s32.totalorder %v97, 0
    %v99 = vsub.s32 0, %v97
    %v100 = vsel %vm98, %v99, %v97
    %v101 = vclz %v100
    %v102 = vsub.s32 %v101, 2
    %vm103 = vcmp.gt.s32.totalorder 0, %v102
    %v104 = vsel %vm103, 0, %v102
    %v105 = vsub.s32 32, %v104
    %v106 = vshll.u32 %v97, %v104
    %v107 = vshrl.u32 %v89, %v105
    %v108 = vor.u32 %v106, %v107
    %v109 = vsub.s32 4294967266, %v104
    %v110 = vadd.s32 %v109, 127
    %v111 = vshll.u32 %v110, 23
    %v112 = vor.u32 4788187, %v111
    %v113 = vand.u32 2147483647, %v112
    %v115 = vcvt.s32.f32 %v108
    %v116 = vmul.f32 %v115, %v113
    %v117 = vxor.u32 %v116, 2147483648
    %v118 = vsel %vm35, %v117, %v116
    %v119 = vsub.s32 4, %v95
    %v120 = vsel %vm35, %v119, %v95
    %v121 = vsel %vm34, %v21, %v118
    %v122 = vsel %vm34, 0, %v120
    %v123 = vcosq.f32.pop %v121
    %v124 = vsinq.f32.pop %v121
    %vm125 = vweird.f32 %v21
    %v126 = vadd.s32 %v122, 3
    %v127 = vand.u32 %v126, 3
    %vm128 = vcmp.lt.s32.totalorder %v127, 2
    %vm129 = vcmp.eq.s32.totalorder %v127, 0
    %v130 = vxor.u32 %v124, 2147483648
    %v131 = vsel %vm129, %v123, %v130
    %vm132 = vcmp.eq.s32.totalorder %v127, 2
    %v133 = vxor.u32 %v123, 2147483648
    %v134 = vsel %vm132, %v133, %v124
    %v135 = vsel %vm128, %v131, %v134
    %v136 = vsel %vm125, nan, %v135
    %v137 = vand.u32 2147483647, %v22
    %vm138 = vcmp.le.f32.partialorder %v137, 0.7853982
    %vm139 = vcmp.lt.s32.totalorder %v22, 0
    %v140 = vand.u32 %v22, 2139095040
    %v141 = vshrl.u32 %v140, 23
    %v142 = vsub.s32 %v141, 127
    %v143 = vand.u32 2147483647, %v22
    %v144 = vand.u32 %v143, 8388607
    %v145 = vor.u32 %v144, 8388608
    %v146 = vsub.s32 0, %v145
    %v147 = vadd.s32 %v142, 1
    %vm148 = vcmp.gt.s32.totalorder %v147, 0
    %v149 = vsel %vm148, %v147, 0
    %v150 = vshrl.u32 %v149, 5
    %v151 = vand.u32 %v149, 31
    %v152 = vsub.s32 32, %v151
    %v153 = vshrl.u32 683565275, %v152
    %v154 = vshll.u32 683565275, %v151
    %v155 = vshrl.u32 2475754826, %v152
    %v156 = vor.u32 %v154, %v155
    %v157 = vshll.u32 2475754826, %v151
    %v158 = vshrl.u32 2131351028, %v152
    %v159 = vor.u32 %v157, %v158
    %v160 = vshll.u32 2131351028, %v151
    %v161 = vshrl.u32 2102212464, %v152
    %v162 = vor.u32 %v160, %v161
    %v163 = vshll.u32 2102212464, %v151
    %v164 = vshrl.u32 920167782, %v152
    %v165 = vor.u32 %v163, %v164
    %v166 = vshll.u32 920167782, %v151
    %v167 = vshrl.u32 1326507024, %v152
    %v168 = vor.u32 %v166, %v167
    %vm169 = vcmp.lt.s32.totalorder %v150, 1
    %vm170 = vcmp.lt.s32.totalorder %v150, 2
    %vm171 = vcmp.lt.s32.totalorder %v150, 3
    %vm172 = vcmp.lt.s32.totalorder %v150, 4
    %v173 = vsel %vm169, %v153, %v156
    %v174 = vsel %vm172, %v162, 2102212464
    %v175 = vsel %vm171, %v159, %v174
    %v176 = vsel %vm170, %v173, %v175
    %v177 = vsel %vm169, %v156, %v159
    %v178 = vsel %vm172, %v165, 920167782
    %v179 = vsel %vm171, %v162, %v178
    %v180 = vsel %vm170, %v177, %v179
    %v181 = vsel %vm169, %v159, %v162
    %v182 = vsel %vm172, %v168, 1326507024
    %v183 = vsel %vm171, %v165, %v182
    %v184 = vsel %vm170, %v181, %v183
    %v185 = vshll.u32 %v145, 8
    %v186 = vmul.u32.u64.compose %v185, %v184
    %v187 = vextract.low.u32 %v186
    %v188 = vextract.high.u32 %v186
    %v189 = vmul.u32.u64.compose %v185, %v180
    %v190 = vextract.low.u32 %v189
    %v191 = vextract.high.u32 %v189
    %v192 = vmul.u32 %v185, %v176
    %v193 = vadd.s32 %v188, %v190
    %vm194 = vc.u32 %v188, %v190
    %v195 = vadd.s32 %v191, 1
    %v196 = vsel %vm194, %v195, %v191
    %v197 = vadd.s32 %v192, %v196
    %v198 = vadd.s32 %v197, 536870912
    %v199 = vshrl.u32 %v198, 30
    %v200 = vshll.u32 %v199, 30
    %v201 = vsub.s32 %v197, %v200
    %vm202 = vcmp.lt.s32.totalorder %v201, 0
    %v203 = vsub.s32 0, %v201
    %v204 = vsel %vm202, %v203, %v201
    %v205 = vclz %v204
    %v206 = vsub.s32 %v205, 2
    %vm207 = vcmp.gt.s32.totalorder 0, %v206
    %v208 = vsel %vm207, 0, %v206
    %v209 = vsub.s32 32, %v208
    %v210 = vshll.u32 %v201, %v208
    %v211 = vshrl.u32 %v193, %v209
    %v212 = vor.u32 %v210, %v211
    %v213 = vsub.s32 4294967266, %v208
    %v214 = vadd.s32 %v213, 127
    %v215 = vshll.u32 %v214, 23
    %v216 = vor.u32 4788187, %v215
    %v217 = vand.u32 2147483647, %v216
    %v219 = vcvt.s32.f32 %v212
    %v220 = vmul.f32 %v219, %v217
    %v221 = vxor.u32 %v220, 2147483648
    %v222 = vsel %vm139, %v221, %v220
    %v223 = vsub.s32 4, %v199
    %v224 = vsel %vm139, %v223, %v199
    %v225 = vsel %vm138, %v22, %v222
    %v226 = vsel %vm138, 0, %v224
    %v227 = vcosq.f32.pop %v225
    %v228 = vsinq.f32.pop %v225
    %vm229 = vweird.f32 %v22
    %v230 = vadd.s32 %v226, 3
    %v231 = vand.u32 %v230, 3
    %vm232 = vcmp.lt.s32.totalorder %v231, 2
    %vm233 = vcmp.eq.s32.totalorder %v231, 0
    %v234 = vxor.u32 %v228, 2147483648
    %v235 = vsel %vm233, %v227, %v234
    %vm236 = vcmp.eq.s32.totalorder %v231, 2
    %v237 = vxor.u32 %v227, 2147483648
    %v238 = vsel %vm236, %v237, %v228
    %v239 = vsel %vm232, %v235, %v238
    %v240 = vsel %vm229, nan, %v239
    %v243 = vcombine.low %v136, %v136
    %v244 = vcombine.low %v240, %v240
    %247 = vst [vmem:[#allocation5] sm:$0xf0] %v243
    %248 = vst [vmem:[#allocation5 + $0x8] sm:$0xf0] %v136
    %249 = vst [vmem:[#allocation5 + $0x10] sm:$0xf0] %v244
    %250 = vst [vmem:[#allocation5 + $0x18] sm:$0xf0] %v240
    %v251 = vadd.f32 %v21, 1.5707964
    %v252 = vadd.f32 %v22, 1.5707964
    %v253 = vand.u32 2147483647, %v251
    %vm254 = vcmp.le.f32.partialorder %v253, 0.7853982
    %vm255 = vcmp.lt.s32.totalorder %v251, 0
    %v256 = vand.u32 %v251, 2139095040
    %v257 = vshrl.u32 %v256, 23
    %v258 = vsub.s32 %v257, 127
    %v259 = vand.u32 2147483647, %v251
    %v260 = vand.u32 %v259, 8388607
    %v261 = vor.u32 %v260, 8388608
    %v262 = vsub.s32 0, %v261
    %v263 = vadd.s32 %v258, 1
    %vm264 = vcmp.gt.s32.totalorder %v263, 0
    %v265 = vsel %vm264, %v263, 0
    %v266 = vshrl.u32 %v265, 5
    %v267 = vand.u32 %v265, 31
    %v268 = vsub.s32 32, %v267
    %v269 = vshrl.u32 683565275, %v268
    %v270 = vshll.u32 683565275, %v267
    %v271 = vshrl.u32 2475754826, %v268
    %v272 = vor.u32 %v270, %v271
    %v273 = vshll.u32 2475754826, %v267
    %v274 = vshrl.u32 2131351028, %v268
    %v275 = vor.u32 %v273, %v274
    %v276 = vshll.u32 2131351028, %v267
    %v277 = vshrl.u32 2102212464, %v268
    %v278 = vor.u32 %v276, %v277
    %v279 = vshll.u32 2102212464, %v267
    %v280 = vshrl.u32 920167782, %v268
    %v281 = vor.u32 %v279, %v280
    %v282 = vshll.u32 920167782, %v267
    %v283 = vshrl.u32 1326507024, %v268
    %v284 = vor.u32 %v282, %v283
    %vm285 = vcmp.lt.s32.totalorder %v266, 1
    %vm286 = vcmp.lt.s32.totalorder %v266, 2
    %vm287 = vcmp.lt.s32.totalorder %v266, 3
    %vm288 = vcmp.lt.s32.totalorder %v266, 4
    %v289 = vsel %vm285, %v269, %v272
    %v290 = vsel %vm288, %v278, 2102212464
    %v291 = vsel %vm287, %v275, %v290
    %v292 = vsel %vm286, %v289, %v291
    %v293 = vsel %vm285, %v272, %v275
    %v294 = vsel %vm288, %v281, 920167782
    %v295 = vsel %vm287, %v278, %v294
    %v296 = vsel %vm286, %v293, %v295
    %v297 = vsel %vm285, %v275, %v278
    %v298 = vsel %vm288, %v284, 1326507024
    %v299 = vsel %vm287, %v281, %v298
    %v300 = vsel %vm286, %v297, %v299
    %v301 = vshll.u32 %v261, 8
    %v302 = vmul.u32.u64.compose %v301, %v300
    %v303 = vextract.low.u32 %v302
    %v304 = vextract.high.u32 %v302
    %v305 = vmul.u32.u64.compose %v301, %v296
    %v306 = vextract.low.u32 %v305
    %v307 = vextract.high.u32 %v305
    %v308 = vmul.u32 %v301, %v292
    %v309 = vadd.s32 %v304, %v306
    %vm310 = vc.u32 %v304, %v306
    %v311 = vadd.s32 %v307, 1
    %v312 = vsel %vm310, %v311, %v307
    %v313 = vadd.s32 %v308, %v312
    %v314 = vadd.s32 %v313, 536870912
    %v315 = vshrl.u32 %v314, 30
    %v316 = vshll.u32 %v315, 30
    %v317 = vsub.s32 %v313, %v316
    %vm318 = vcmp.lt.s32.totalorder %v317, 0
    %v319 = vsub.s32 0, %v317
    %v320 = vsel %vm318, %v319, %v317
    %v321 = vclz %v320
    %v322 = vsub.s32 %v321, 2
    %vm323 = vcmp.gt.s32.totalorder 0, %v322
    %v324 = vsel %vm323, 0, %v322
    %v325 = vsub.s32 32, %v324
    %v326 = vshll.u32 %v317, %v324
    %v327 = vshrl.u32 %v309, %v325
    %v328 = vor.u32 %v326, %v327
    %v329 = vsub.s32 4294967266, %v324
    %v330 = vadd.s32 %v329, 127
    %v331 = vshll.u32 %v330, 23
    %v332 = vor.u32 4788187, %v331
    %v333 = vand.u32 2147483647, %v332
    %v335 = vcvt.s32.f32 %v328
    %v336 = vmul.f32 %v335, %v333
    %v337 = vxor.u32 %v336, 2147483648
    %v338 = vsel %vm255, %v337, %v336
    %v339 = vsub.s32 4, %v315
    %v340 = vsel %vm255, %v339, %v315
    %v341 = vsel %vm254, %v251, %v338
    %v342 = vsel %vm254, 0, %v340
    %v343 = vcosq.f32.pop %v341
    %v344 = vsinq.f32.pop %v341
    %vm345 = vweird.f32 %v251
    %v346 = vadd.s32 %v342, 3
    %v347 = vand.u32 %v346, 3
    %vm348 = vcmp.lt.s32.totalorder %v347, 2
    %vm349 = vcmp.eq.s32.totalorder %v347, 0
    %v350 = vxor.u32 %v344, 2147483648
    %v351 = vsel %vm349, %v343, %v350
    %vm352 = vcmp.eq.s32.totalorder %v347, 2
    %v353 = vxor.u32 %v343, 2147483648
    %v354 = vsel %vm352, %v353, %v344
    %v355 = vsel %vm348, %v351, %v354
    %v356 = vsel %vm345, nan, %v355
    %v357 = vand.u32 2147483647, %v252
    %vm358 = vcmp.le.f32.partialorder %v357, 0.7853982
    %vm359 = vcmp.lt.s32.totalorder %v252, 0
    %v360 = vand.u32 %v252, 2139095040
    %v361 = vshrl.u32 %v360, 23
    %v362 = vsub.s32 %v361, 127
    %v363 = vand.u32 2147483647, %v252
    %v364 = vand.u32 %v363, 8388607
    %v365 = vor.u32 %v364, 8388608
    %v366 = vsub.s32 0, %v365
    %v367 = vadd.s32 %v362, 1
    %vm368 = vcmp.gt.s32.totalorder %v367, 0
    %v369 = vsel %vm368, %v367, 0
    %v370 = vshrl.u32 %v369, 5
    %v371 = vand.u32 %v369, 31
    %v372 = vsub.s32 32, %v371
    %v373 = vshrl.u32 683565275, %v372
    %v374 = vshll.u32 683565275, %v371
    %v375 = vshrl.u32 2475754826, %v372
    %v376 = vor.u32 %v374, %v375
    %v377 = vshll.u32 2475754826, %v371
    %v378 = vshrl.u32 2131351028, %v372
    %v379 = vor.u32 %v377, %v378
    %v380 = vshll.u32 2131351028, %v371
    %v381 = vshrl.u32 2102212464, %v372
    %v382 = vor.u32 %v380, %v381
    %v383 = vshll.u32 2102212464, %v371
    %v384 = vshrl.u32 920167782, %v372
    %v385 = vor.u32 %v383, %v384
    %v386 = vshll.u32 920167782, %v371
    %v387 = vshrl.u32 1326507024, %v372
    %v388 = vor.u32 %v386, %v387
    %vm389 = vcmp.lt.s32.totalorder %v370, 1
    %vm390 = vcmp.lt.s32.totalorder %v370, 2
    %vm391 = vcmp.lt.s32.totalorder %v370, 3
    %vm392 = vcmp.lt.s32.totalorder %v370, 4
    %v393 = vsel %vm389, %v373, %v376
    %v394 = vsel %vm392, %v382, 2102212464
    %v395 = vsel %vm391, %v379, %v394
    %v396 = vsel %vm390, %v393, %v395
    %v397 = vsel %vm389, %v376, %v379
    %v398 = vsel %vm392, %v385, 920167782
    %v399 = vsel %vm391, %v382, %v398
    %v400 = vsel %vm390, %v397, %v399
    %v401 = vsel %vm389, %v379, %v382
    %v402 = vsel %vm392, %v388, 1326507024
    %v403 = vsel %vm391, %v385, %v402
    %v404 = vsel %vm390, %v401, %v403
    %v405 = vshll.u32 %v365, 8
    %v406 = vmul.u32.u64.compose %v405, %v404
    %v407 = vextract.low.u32 %v406
    %v408 = vextract.high.u32 %v406
    %v409 = vmul.u32.u64.compose %v405, %v400
    %v410 = vextract.low.u32 %v409
    %v411 = vextract.high.u32 %v409
    %v412 = vmul.u32 %v405, %v396
    %v413 = vadd.s32 %v408, %v410
    %vm414 = vc.u32 %v408, %v410
    %v415 = vadd.s32 %v411, 1
    %v416 = vsel %vm414, %v415, %v411
    %v417 = vadd.s32 %v412, %v416
    %v418 = vadd.s32 %v417, 536870912
    %v419 = vshrl.u32 %v418, 30
    %v420 = vshll.u32 %v419, 30
    %v421 = vsub.s32 %v417, %v420
    %vm422 = vcmp.lt.s32.totalorder %v421, 0
    %v423 = vsub.s32 0, %v421
    %v424 = vsel %vm422, %v423, %v421
    %v425 = vclz %v424
    %v426 = vsub.s32 %v425, 2
    %vm427 = vcmp.gt.s32.totalorder 0, %v426
    %v428 = vsel %vm427, 0, %v426
    %v429 = vsub.s32 32, %v428
    %v430 = vshll.u32 %v421, %v428
    %v431 = vshrl.u32 %v413, %v429
    %v432 = vor.u32 %v430, %v431
    %v433 = vsub.s32 4294967266, %v428
    %v434 = vadd.s32 %v433, 127
    %v435 = vshll.u32 %v434, 23
    %v436 = vor.u32 4788187, %v435
    %v437 = vand.u32 2147483647, %v436
    %v439 = vcvt.s32.f32 %v432
    %v440 = vmul.f32 %v439, %v437
    %v441 = vxor.u32 %v440, 2147483648
    %v442 = vsel %vm359, %v441, %v440
    %v443 = vsub.s32 4, %v419
    %v444 = vsel %vm359, %v443, %v419
    %v445 = vsel %vm358, %v252, %v442
    %v446 = vsel %vm358, 0, %v444
    %v447 = vcosq.f32.pop %v445
    %v448 = vsinq.f32.pop %v445
    %vm449 = vweird.f32 %v252
    %v450 = vadd.s32 %v446, 3
    %v451 = vand.u32 %v450, 3
    %vm452 = vcmp.lt.s32.totalorder %v451, 2
    %vm453 = vcmp.eq.s32.totalorder %v451, 0
    %v454 = vxor.u32 %v448, 2147483648
    %v455 = vsel %vm453, %v447, %v454
    %vm456 = vcmp.eq.s32.totalorder %v451, 2
    %v457 = vxor.u32 %v447, 2147483648
    %v458 = vsel %vm456, %v457, %v448
    %v459 = vsel %vm452, %v455, %v458
    %v460 = vsel %vm449, nan, %v459
    %v463 = vcombine.low %v356, %v356
    %v464 = vcombine.low %v460, %v460
    %467 = vst [vmem:[#allocation5 + $0x40] sm:$0xf0] %v463
    %468 = vst [vmem:[#allocation5 + $0x48] sm:$0xf0] %v356
    %469 = vst [vmem:[#allocation5 + $0x50] sm:$0xf0] %v464
    %470 = vst [vmem:[#allocation5 + $0x58] sm:$0xf0] %v460
    %v471 = vmul.f32 %v21, 2.0
    %v472 = vmul.f32 %v22, 2.0
    %v473 = vand.u32 2147483647, %v471
    %vm474 = vcmp.le.f32.partialorder %v473, 0.7853982
    %vm475 = vcmp.lt.s32.totalorder %v471, 0
    %v476 = vand.u32 %v471, 2139095040
    %v477 = vshrl.u32 %v476, 23
    %v478 = vsub.s32 %v477, 127
    %v479 = vand.u32 2147483647, %v471
    %v480 = vand.u32 %v479, 8388607
    %v481 = vor.u32 %v480, 8388608
    %v482 = vsub.s32 0, %v481
    %v483 = vadd.s32 %v478, 1
    %vm484 = vcmp.gt.s32.totalorder %v483, 0
    %v485 = vsel %vm484, %v483, 0
    %v486 = vshrl.u32 %v485, 5
    %v487 = vand.u32 %v485, 31
    %v488 = vsub.s32 32, %v487
    %v489 = vshrl.u32 683565275, %v488
    %v490 = vshll.u32 683565275, %v487
    %v491 = vshrl.u32 2475754826, %v488
    %v492 = vor.u32 %v490, %v491
    %v493 = vshll.u32 2475754826, %v487
    %v494 = vshrl.u32 2131351028, %v488
    %v495 = vor.u32 %v493, %v494
    %v496 = vshll.u32 2131351028, %v487
    %v497 = vshrl.u32 2102212464, %v488
    %v498 = vor.u32 %v496, %v497
    %v499 = vshll.u32 2102212464, %v487
    %v500 = vshrl.u32 920167782, %v488
    %v501 = vor.u32 %v499, %v500
    %v502 = vshll.u32 920167782, %v487
    %v503 = vshrl.u32 1326507024, %v488
    %v504 = vor.u32 %v502, %v503
    %vm505 = vcmp.lt.s32.totalorder %v486, 1
    %vm506 = vcmp.lt.s32.totalorder %v486, 2
    %vm507 = vcmp.lt.s32.totalorder %v486, 3
    %vm508 = vcmp.lt.s32.totalorder %v486, 4
    %v509 = vsel %vm505, %v489, %v492
    %v510 = vsel %vm508, %v498, 2102212464
    %v511 = vsel %vm507, %v495, %v510
    %v512 = vsel %vm506, %v509, %v511
    %v513 = vsel %vm505, %v492, %v495
    %v514 = vsel %vm508, %v501, 920167782
    %v515 = vsel %vm507, %v498, %v514
    %v516 = vsel %vm506, %v513, %v515
    %v517 = vsel %vm505, %v495, %v498
    %v518 = vsel %vm508, %v504, 1326507024
    %v519 = vsel %vm507, %v501, %v518
    %v520 = vsel %vm506, %v517, %v519
    %v521 = vshll.u32 %v481, 8
    %v522 = vmul.u32.u64.compose %v521, %v520
    %v523 = vextract.low.u32 %v522
    %v524 = vextract.high.u32 %v522
    %v525 = vmul.u32.u64.compose %v521, %v516
    %v526 = vextract.low.u32 %v525
    %v527 = vextract.high.u32 %v525
    %v528 = vmul.u32 %v521, %v512
    %v529 = vadd.s32 %v524, %v526
    %vm530 = vc.u32 %v524, %v526
    %v531 = vadd.s32 %v527, 1
    %v532 = vsel %vm530, %v531, %v527
    %v533 = vadd.s32 %v528, %v532
    %v534 = vadd.s32 %v533, 536870912
    %v535 = vshrl.u32 %v534, 30
    %v536 = vshll.u32 %v535, 30
    %v537 = vsub.s32 %v533, %v536
    %vm538 = vcmp.lt.s32.totalorder %v537, 0
    %v539 = vsub.s32 0, %v537
    %v540 = vsel %vm538, %v539, %v537
    %v541 = vclz %v540
    %v542 = vsub.s32 %v541, 2
    %vm543 = vcmp.gt.s32.totalorder 0, %v542
    %v544 = vsel %vm543, 0, %v542
    %v545 = vsub.s32 32, %v544
    %v546 = vshll.u32 %v537, %v544
    %v547 = vshrl.u32 %v529, %v545
    %v548 = vor.u32 %v546, %v547
    %v549 = vsub.s32 4294967266, %v544
    %v550 = vadd.s32 %v549, 127
    %v551 = vshll.u32 %v550, 23
    %v552 = vor.u32 4788187, %v551
    %v553 = vand.u32 2147483647, %v552
    %v555 = vcvt.s32.f32 %v548
    %v556 = vmul.f32 %v555, %v553
    %v557 = vxor.u32 %v556, 2147483648
    %v558 = vsel %vm475, %v557, %v556
    %v559 = vsub.s32 4, %v535
    %v560 = vsel %vm475, %v559, %v535
    %v561 = vsel %vm474, %v471, %v558
    %v562 = vsel %vm474, 0, %v560
    %v563 = vcosq.f32.pop %v561
    %v564 = vsinq.f32.pop %v561
    %vm565 = vweird.f32 %v471
    %v566 = vadd.s32 %v562, 3
    %v567 = vand.u32 %v566, 3
    %vm568 = vcmp.lt.s32.totalorder %v567, 2
    %vm569 = vcmp.eq.s32.totalorder %v567, 0
    %v570 = vxor.u32 %v564, 2147483648
    %v571 = vsel %vm569, %v563, %v570
    %vm572 = vcmp.eq.s32.totalorder %v567, 2
    %v573 = vxor.u32 %v563, 2147483648
    %v574 = vsel %vm572, %v573, %v564
    %v575 = vsel %vm568, %v571, %v574
    %v576 = vsel %vm565, nan, %v575
    %v577 = vand.u32 2147483647, %v472
    %vm578 = vcmp.le.f32.partialorder %v577, 0.7853982
    %vm579 = vcmp.lt.s32.totalorder %v472, 0
    %v580 = vand.u32 %v472, 2139095040
    %v581 = vshrl.u32 %v580, 23
    %v582 = vsub.s32 %v581, 127
    %v583 = vand.u32 2147483647, %v472
    %v584 = vand.u32 %v583, 8388607
    %v585 = vor.u32 %v584, 8388608
    %v586 = vsub.s32 0, %v585
    %v587 = vadd.s32 %v582, 1
    %vm588 = vcmp.gt.s32.totalorder %v587, 0
    %v589 = vsel %vm588, %v587, 0
    %v590 = vshrl.u32 %v589, 5
    %v591 = vand.u32 %v589, 31
    %v592 = vsub.s32 32, %v591
    %v593 = vshrl.u32 683565275, %v592
    %v594 = vshll.u32 683565275, %v591
    %v595 = vshrl.u32 2475754826, %v592
    %v596 = vor.u32 %v594, %v595
    %v597 = vshll.u32 2475754826, %v591
    %v598 = vshrl.u32 2131351028, %v592
    %v599 = vor.u32 %v597, %v598
    %v600 = vshll.u32 2131351028, %v591
    %v601 = vshrl.u32 2102212464, %v592
    %v602 = vor.u32 %v600, %v601
    %v603 = vshll.u32 2102212464, %v591
    %v604 = vshrl.u32 920167782, %v592
    %v605 = vor.u32 %v603, %v604
    %v606 = vshll.u32 920167782, %v591
    %v607 = vshrl.u32 1326507024, %v592
    %v608 = vor.u32 %v606, %v607
    %vm609 = vcmp.lt.s32.totalorder %v590, 1
    %vm610 = vcmp.lt.s32.totalorder %v590, 2
    %vm611 = vcmp.lt.s32.totalorder %v590, 3
    %vm612 = vcmp.lt.s32.totalorder %v590, 4
    %v613 = vsel %vm609, %v593, %v596
    %v614 = vsel %vm612, %v602, 2102212464
    %v615 = vsel %vm611, %v599, %v614
    %v616 = vsel %vm610, %v613, %v615
    %v617 = vsel %vm609, %v596, %v599
    %v618 = vsel %vm612, %v605, 920167782
    %v619 = vsel %vm611, %v602, %v618
    %v620 = vsel %vm610, %v617, %v619
    %v621 = vsel %vm609, %v599, %v602
    %v622 = vsel %vm612, %v608, 1326507024
    %v623 = vsel %vm611, %v605, %v622
    %v624 = vsel %vm610, %v621, %v623
    %v625 = vshll.u32 %v585, 8
    %v626 = vmul.u32.u64.compose %v625, %v624
    %v627 = vextract.low.u32 %v626
    %v628 = vextract.high.u32 %v626
    %v629 = vmul.u32.u64.compose %v625, %v620
    %v630 = vextract.low.u32 %v629
    %v631 = vextract.high.u32 %v629
    %v632 = vmul.u32 %v625, %v616
    %v633 = vadd.s32 %v628, %v630
    %vm634 = vc.u32 %v628, %v630
    %v635 = vadd.s32 %v631, 1
    %v636 = vsel %vm634, %v635, %v631
    %v637 = vadd.s32 %v632, %v636
    %v638 = vadd.s32 %v637, 536870912
    %v639 = vshrl.u32 %v638, 30
    %v640 = vshll.u32 %v639, 30
    %v641 = vsub.s32 %v637, %v640
    %vm642 = vcmp.lt.s32.totalorder %v641, 0
    %v643 = vsub.s32 0, %v641
    %v644 = vsel %vm642, %v643, %v641
    %v645 = vclz %v644
    %v646 = vsub.s32 %v645, 2
    %vm647 = vcmp.gt.s32.totalorder 0, %v646
    %v648 = vsel %vm647, 0, %v646
    %v649 = vsub.s32 32, %v648
    %v650 = vshll.u32 %v641, %v648
    %v651 = vshrl.u32 %v633, %v649
    %v652 = vor.u32 %v650, %v651
    %v653 = vsub.s32 4294967266, %v648
    %v654 = vadd.s32 %v653, 127
    %v655 = vshll.u32 %v654, 23
    %v656 = vor.u32 4788187, %v655
    %v657 = vand.u32 2147483647, %v656
    %v659 = vcvt.s32.f32 %v652
    %v660 = vmul.f32 %v659, %v657
    %v661 = vxor.u32 %v660, 2147483648
    %v662 = vsel %vm579, %v661, %v660
    %v663 = vsub.s32 4, %v639
    %v664 = vsel %vm579, %v663, %v639
    %v665 = vsel %vm578, %v472, %v662
    %v666 = vsel %vm578, 0, %v664
    %v667 = vcosq.f32.pop %v665
    %v668 = vsinq.f32.pop %v665
    %vm669 = vweird.f32 %v472
    %v670 = vadd.s32 %v666, 3
    %v671 = vand.u32 %v670, 3
    %vm672 = vcmp.lt.s32.totalorder %v671, 2
    %vm673 = vcmp.eq.s32.totalorder %v671, 0
    %v674 = vxor.u32 %v668, 2147483648
    %v675 = vsel %vm673, %v667, %v674
    %vm676 = vcmp.eq.s32.totalorder %v671, 2
    %v677 = vxor.u32 %v667, 2147483648
    %v678 = vsel %vm676, %v677, %v668
    %v679 = vsel %vm672, %v675, %v678
    %v680 = vsel %vm669, nan, %v679
    %v683 = vcombine.high %v576, %v576
    %v684 = vcombine.high %v680, %v680
    %687 = vst [vmem:[#allocation5 + $0x20] sm:$0xf] %v576
    %688 = vst [vmem:[#allocation5 + $0x28] sm:$0xf] %v683
    %689 = vst [vmem:[#allocation5 + $0x30] sm:$0xf] %v680
    %690 = vst [vmem:[#allocation5 + $0x38] sm:$0xf] %v684
    %v691 = vadd.f32 %v471, 1.5707964
    %v692 = vadd.f32 %v472, 1.5707964
    %v693 = vand.u32 2147483647, %v691
    %vm694 = vcmp.le.f32.partialorder %v693, 0.7853982
    %vm695 = vcmp.lt.s32.totalorder %v691, 0
    %v696 = vand.u32 %v691, 2139095040
    %v697 = vshrl.u32 %v696, 23
    %v698 = vsub.s32 %v697, 127
    %v699 = vand.u32 2147483647, %v691
    %v700 = vand.u32 %v699, 8388607
    %v701 = vor.u32 %v700, 8388608
    %v702 = vsub.s32 0, %v701
    %v703 = vadd.s32 %v698, 1
    %vm704 = vcmp.gt.s32.totalorder %v703, 0
    %v705 = vsel %vm704, %v703, 0
    %v706 = vshrl.u32 %v705, 5
    %v707 = vand.u32 %v705, 31
    %v708 = vsub.s32 32, %v707
    %v709 = vshrl.u32 683565275, %v708
    %v710 = vshll.u32 683565275, %v707
    %v711 = vshrl.u32 2475754826, %v708
    %v712 = vor.u32 %v710, %v711
    %v713 = vshll.u32 2475754826, %v707
    %v714 = vshrl.u32 2131351028, %v708
    %v715 = vor.u32 %v713, %v714
    %v716 = vshll.u32 2131351028, %v707
    %v717 = vshrl.u32 2102212464, %v708
    %v718 = vor.u32 %v716, %v717
    %v719 = vshll.u32 2102212464, %v707
    %v720 = vshrl.u32 920167782, %v708
    %v721 = vor.u32 %v719, %v720
    %v722 = vshll.u32 920167782, %v707
    %v723 = vshrl.u32 1326507024, %v708
    %v724 = vor.u32 %v722, %v723
    %vm725 = vcmp.lt.s32.totalorder %v706, 1
    %vm726 = vcmp.lt.s32.totalorder %v706, 2
    %vm727 = vcmp.lt.s32.totalorder %v706, 3
    %vm728 = vcmp.lt.s32.totalorder %v706, 4
    %v729 = vsel %vm725, %v709, %v712
    %v730 = vsel %vm728, %v718, 2102212464
    %v731 = vsel %vm727, %v715, %v730
    %v732 = vsel %vm726, %v729, %v731
    %v733 = vsel %vm725, %v712, %v715
    %v734 = vsel %vm728, %v721, 920167782
    %v735 = vsel %vm727, %v718, %v734
    %v736 = vsel %vm726, %v733, %v735
    %v737 = vsel %vm725, %v715, %v718
    %v738 = vsel %vm728, %v724, 1326507024
    %v739 = vsel %vm727, %v721, %v738
    %v740 = vsel %vm726, %v737, %v739
    %v741 = vshll.u32 %v701, 8
    %v742 = vmul.u32.u64.compose %v741, %v740
    %v743 = vextract.low.u32 %v742
    %v744 = vextract.high.u32 %v742
    %v745 = vmul.u32.u64.compose %v741, %v736
    %v746 = vextract.low.u32 %v745
    %v747 = vextract.high.u32 %v745
    %v748 = vmul.u32 %v741, %v732
    %v749 = vadd.s32 %v744, %v746
    %vm750 = vc.u32 %v744, %v746
    %v751 = vadd.s32 %v747, 1
    %v752 = vsel %vm750, %v751, %v747
    %v753 = vadd.s32 %v748, %v752
    %v754 = vadd.s32 %v753, 536870912
    %v755 = vshrl.u32 %v754, 30
    %v756 = vshll.u32 %v755, 30
    %v757 = vsub.s32 %v753, %v756
    %vm758 = vcmp.lt.s32.totalorder %v757, 0
    %v759 = vsub.s32 0, %v757
    %v760 = vsel %vm758, %v759, %v757
    %v761 = vclz %v760
    %v762 = vsub.s32 %v761, 2
    %vm763 = vcmp.gt.s32.totalorder 0, %v762
    %v764 = vsel %vm763, 0, %v762
    %v765 = vsub.s32 32, %v764
    %v766 = vshll.u32 %v757, %v764
    %v767 = vshrl.u32 %v749, %v765
    %v768 = vor.u32 %v766, %v767
    %v769 = vsub.s32 4294967266, %v764
    %v770 = vadd.s32 %v769, 127
    %v771 = vshll.u32 %v770, 23
    %v772 = vor.u32 4788187, %v771
    %v773 = vand.u32 2147483647, %v772
    %v775 = vcvt.s32.f32 %v768
    %v776 = vmul.f32 %v775, %v773
    %v777 = vxor.u32 %v776, 2147483648
    %v778 = vsel %vm695, %v777, %v776
    %v779 = vsub.s32 4, %v755
    %v780 = vsel %vm695, %v779, %v755
    %v781 = vsel %vm694, %v691, %v778
    %v782 = vsel %vm694, 0, %v780
    %v783 = vcosq.f32.pop %v781
    %v784 = vsinq.f32.pop %v781
    %vm785 = vweird.f32 %v691
    %v786 = vadd.s32 %v782, 3
    %v787 = vand.u32 %v786, 3
    %vm788 = vcmp.lt.s32.totalorder %v787, 2
    %vm789 = vcmp.eq.s32.totalorder %v787, 0
    %v790 = vxor.u32 %v784, 2147483648
    %v791 = vsel %vm789, %v783, %v790
    %vm792 = vcmp.eq.s32.totalorder %v787, 2
    %v793 = vxor.u32 %v783, 2147483648
    %v794 = vsel %vm792, %v793, %v784
    %v795 = vsel %vm788, %v791, %v794
    %v796 = vsel %vm785, nan, %v795
    %v797 = vand.u32 2147483647, %v692
    %vm798 = vcmp.le.f32.partialorder %v797, 0.7853982
    %vm799 = vcmp.lt.s32.totalorder %v692, 0
    %v800 = vand.u32 %v692, 2139095040
    %v801 = vshrl.u32 %v800, 23
    %v802 = vsub.s32 %v801, 127
    %v803 = vand.u32 2147483647, %v692
    %v804 = vand.u32 %v803, 8388607
    %v805 = vor.u32 %v804, 8388608
    %v806 = vsub.s32 0, %v805
    %v807 = vadd.s32 %v802, 1
    %vm808 = vcmp.gt.s32.totalorder %v807, 0
    %v809 = vsel %vm808, %v807, 0
    %v810 = vshrl.u32 %v809, 5
    %v811 = vand.u32 %v809, 31
    %v812 = vsub.s32 32, %v811
    %v813 = vshrl.u32 683565275, %v812
    %v814 = vshll.u32 683565275, %v811
    %v815 = vshrl.u32 2475754826, %v812
    %v816 = vor.u32 %v814, %v815
    %v817 = vshll.u32 2475754826, %v811
    %v818 = vshrl.u32 2131351028, %v812
    %v819 = vor.u32 %v817, %v818
    %v820 = vshll.u32 2131351028, %v811
    %v821 = vshrl.u32 2102212464, %v812
    %v822 = vor.u32 %v820, %v821
    %v823 = vshll.u32 2102212464, %v811
    %v824 = vshrl.u32 920167782, %v812
    %v825 = vor.u32 %v823, %v824
    %v826 = vshll.u32 920167782, %v811
    %v827 = vshrl.u32 1326507024, %v812
    %v828 = vor.u32 %v826, %v827
    %vm829 = vcmp.lt.s32.totalorder %v810, 1
    %vm830 = vcmp.lt.s32.totalorder %v810, 2
    %vm831 = vcmp.lt.s32.totalorder %v810, 3
    %vm832 = vcmp.lt.s32.totalorder %v810, 4
    %v833 = vsel %vm829, %v813, %v816
    %v834 = vsel %vm832, %v822, 2102212464
    %v835 = vsel %vm831, %v819, %v834
    %v836 = vsel %vm830, %v833, %v835
    %v837 = vsel %vm829, %v816, %v819
    %v838 = vsel %vm832, %v825, 920167782
    %v839 = vsel %vm831, %v822, %v838
    %v840 = vsel %vm830, %v837, %v839
    %v841 = vsel %vm829, %v819, %v822
    %v842 = vsel %vm832, %v828, 1326507024
    %v843 = vsel %vm831, %v825, %v842
    %v844 = vsel %vm830, %v841, %v843
    %v845 = vshll.u32 %v805, 8
    %v846 = vmul.u32.u64.compose %v845, %v844
    %v847 = vextract.low.u32 %v846
    %v848 = vextract.high.u32 %v846
    %v849 = vmul.u32.u64.compose %v845, %v840
    %v850 = vextract.low.u32 %v849
    %v851 = vextract.high.u32 %v849
    %v852 = vmul.u32 %v845, %v836
    %v853 = vadd.s32 %v848, %v850
    %vm854 = vc.u32 %v848, %v850
    %v855 = vadd.s32 %v851, 1
    %v856 = vsel %vm854, %v855, %v851
    %v857 = vadd.s32 %v852, %v856
    %v858 = vadd.s32 %v857, 536870912
    %v859 = vshrl.u32 %v858, 30
    %v860 = vshll.u32 %v859, 30
    %v861 = vsub.s32 %v857, %v860
    %vm862 = vcmp.lt.s32.totalorder %v861, 0
    %v863 = vsub.s32 0, %v861
    %v864 = vsel %vm862, %v863, %v861
    %v865 = vclz %v864
    %v866 = vsub.s32 %v865, 2
    %vm867 = vcmp.gt.s32.totalorder 0, %v866
    %v868 = vsel %vm867, 0, %v866
    %v869 = vsub.s32 32, %v868
    %v870 = vshll.u32 %v861, %v868
    %v871 = vshrl.u32 %v853, %v869
    %v872 = vor.u32 %v870, %v871
    %v873 = vsub.s32 4294967266, %v868
    %v874 = vadd.s32 %v873, 127
    %v875 = vshll.u32 %v874, 23
    %v876 = vor.u32 4788187, %v875
    %v877 = vand.u32 2147483647, %v876
    %v879 = vcvt.s32.f32 %v872
    %v880 = vmul.f32 %v879, %v877
    %v881 = vxor.u32 %v880, 2147483648
    %v882 = vsel %vm799, %v881, %v880
    %v883 = vsub.s32 4, %v859
    %v884 = vsel %vm799, %v883, %v859
    %v885 = vsel %vm798, %v692, %v882
    %v886 = vsel %vm798, 0, %v884
    %v887 = vcosq.f32.pop %v885
    %v888 = vsinq.f32.pop %v885
    %vm889 = vweird.f32 %v692
    %v890 = vadd.s32 %v886, 3
    %v891 = vand.u32 %v890, 3
    %vm892 = vcmp.lt.s32.totalorder %v891, 2
    %vm893 = vcmp.eq.s32.totalorder %v891, 0
    %v894 = vxor.u32 %v888, 2147483648
    %v895 = vsel %vm893, %v887, %v894
    %vm896 = vcmp.eq.s32.totalorder %v891, 2
    %v897 = vxor.u32 %v887, 2147483648
    %v898 = vsel %vm896, %v897, %v888
    %v899 = vsel %vm892, %v895, %v898
    %v900 = vsel %vm889, nan, %v899
    %v903 = vcombine.high %v796, %v796
    %v904 = vcombine.high %v900, %v900
    %907 = vst [vmem:[#allocation5 + $0x60] sm:$0xf] %v796
    %908 = vst [vmem:[#allocation5 + $0x68] sm:$0xf] %v903
    %909 = vst [vmem:[#allocation5 + $0x70] sm:$0xf] %v900
    %910 = vst [vmem:[#allocation5 + $0x78] sm:$0xf] %v904
    %v911 = vmul.f32 %v21, 4.0
    %v912 = vmul.f32 %v22, 4.0
    %v913 = vand.u32 2147483647, %v911
    %vm914 = vcmp.le.f32.partialorder %v913, 0.7853982
    %vm915 = vcmp.lt.s32.totalorder %v911, 0
    %v916 = vand.u32 %v911, 2139095040
    %v917 = vshrl.u32 %v916, 23
    %v918 = vsub.s32 %v917, 127
    %v919 = vand.u32 2147483647, %v911
    %v920 = vand.u32 %v919, 8388607
    %v921 = vor.u32 %v920, 8388608
    %v922 = vsub.s32 0, %v921
    %v923 = vadd.s32 %v918, 1
    %vm924 = vcmp.gt.s32.totalorder %v923, 0
    %v925 = vsel %vm924, %v923, 0
    %v926 = vshrl.u32 %v925, 5
    %v927 = vand.u32 %v925, 31
    %v928 = vsub.s32 32, %v927
    %v929 = vshrl.u32 683565275, %v928
    %v930 = vshll.u32 683565275, %v927
    %v931 = vshrl.u32 2475754826, %v928
    %v932 = vor.u32 %v930, %v931
    %v933 = vshll.u32 2475754826, %v927
    %v934 = vshrl.u32 2131351028, %v928
    %v935 = vor.u32 %v933, %v934
    %v936 = vshll.u32 2131351028, %v927
    %v937 = vshrl.u32 2102212464, %v928
    %v938 = vor.u32 %v936, %v937
    %v939 = vshll.u32 2102212464, %v927
    %v940 = vshrl.u32 920167782, %v928
    %v941 = vor.u32 %v939, %v940
    %v942 = vshll.u32 920167782, %v927
    %v943 = vshrl.u32 1326507024, %v928
    %v944 = vor.u32 %v942, %v943
    %vm945 = vcmp.lt.s32.totalorder %v926, 1
    %vm946 = vcmp.lt.s32.totalorder %v926, 2
    %vm947 = vcmp.lt.s32.totalorder %v926, 3
    %vm948 = vcmp.lt.s32.totalorder %v926, 4
    %v949 = vsel %vm945, %v929, %v932
    %v950 = vsel %vm948, %v938, 2102212464
    %v951 = vsel %vm947, %v935, %v950
    %v952 = vsel %vm946, %v949, %v951
    %v953 = vsel %vm945, %v932, %v935
    %v954 = vsel %vm948, %v941, 920167782
    %v955 = vsel %vm947, %v938, %v954
    %v956 = vsel %vm946, %v953, %v955
    %v957 = vsel %vm945, %v935, %v938
    %v958 = vsel %vm948, %v944, 1326507024
    %v959 = vsel %vm947, %v941, %v958
    %v960 = vsel %vm946, %v957, %v959
    %v961 = vshll.u32 %v921, 8
    %v962 = vmul.u32.u64.compose %v961, %v960
    %v963 = vextract.low.u32 %v962
    %v964 = vextract.high.u32 %v962
    %v965 = vmul.u32.u64.compose %v961, %v956
    %v966 = vextract.low.u32 %v965
    %v967 = vextract.high.u32 %v965
    %v968 = vmul.u32 %v961, %v952
    %v969 = vadd.s32 %v964, %v966
    %vm970 = vc.u32 %v964, %v966
    %v971 = vadd.s32 %v967, 1
    %v972 = vsel %vm970, %v971, %v967
    %v973 = vadd.s32 %v968, %v972
    %v974 = vadd.s32 %v973, 536870912
    %v975 = vshrl.u32 %v974, 30
    %v976 = vshll.u32 %v975, 30
    %v977 = vsub.s32 %v973, %v976
    %vm978 = vcmp.lt.s32.totalorder %v977, 0
    %v979 = vsub.s32 0, %v977
    %v980 = vsel %vm978, %v979, %v977
    %v981 = vclz %v980
    %v982 = vsub.s32 %v981, 2
    %vm983 = vcmp.gt.s32.totalorder 0, %v982
    %v984 = vsel %vm983, 0, %v982
    %v985 = vsub.s32 32, %v984
    %v986 = vshll.u32 %v977, %v984
    %v987 = vshrl.u32 %v969, %v985
    %v988 = vor.u32 %v986, %v987
    %v989 = vsub.s32 4294967266, %v984
    %v990 = vadd.s32 %v989, 127
    %v991 = vshll.u32 %v990, 23
    %v992 = vor.u32 4788187, %v991
    %v993 = vand.u32 2147483647, %v992
    %v995 = vcvt.s32.f32 %v988
    %v996 = vmul.f32 %v995, %v993
    %v997 = vxor.u32 %v996, 2147483648
    %v998 = vsel %vm915, %v997, %v996
    %v999 = vsub.s32 4, %v975
    %v1000 = vsel %vm915, %v999, %v975
    %v1001 = vsel %vm914, %v911, %v998
    %v1002 = vsel %vm914, 0, %v1000
    %v1003 = vcosq.f32.pop %v1001
    %v1004 = vsinq.f32.pop %v1001
    %vm1005 = vweird.f32 %v911
    %v1006 = vadd.s32 %v1002, 3
    %v1007 = vand.u32 %v1006, 3
    %vm1008 = vcmp.lt.s32.totalorder %v1007, 2
    %vm1009 = vcmp.eq.s32.totalorder %v1007, 0
    %v1010 = vxor.u32 %v1004, 2147483648
    %v1011 = vsel %vm1009, %v1003, %v1010
    %vm1012 = vcmp.eq.s32.totalorder %v1007, 2
    %v1013 = vxor.u32 %v1003, 2147483648
    %v1014 = vsel %vm1012, %v1013, %v1004
    %v1015 = vsel %vm1008, %v1011, %v1014
    %v1016 = vsel %vm1005, nan, %v1015
    %v1017 = vand.u32 2147483647, %v912
    %vm1018 = vcmp.le.f32.partialorder %v1017, 0.7853982
    %vm1019 = vcmp.lt.s32.totalorder %v912, 0
    %v1020 = vand.u32 %v912, 2139095040
    %v1021 = vshrl.u32 %v1020, 23
    %v1022 = vsub.s32 %v1021, 127
    %v1023 = vand.u32 2147483647, %v912
    %v1024 = vand.u32 %v1023, 8388607
    %v1025 = vor.u32 %v1024, 8388608
    %v1026 = vsub.s32 0, %v1025
    %v1027 = vadd.s32 %v1022, 1
    %vm1028 = vcmp.gt.s32.totalorder %v1027, 0
    %v1029 = vsel %vm1028, %v1027, 0
    %v1030 = vshrl.u32 %v1029, 5
    %v1031 = vand.u32 %v1029, 31
    %v1032 = vsub.s32 32, %v1031
    %v1033 = vshrl.u32 683565275, %v1032
    %v1034 = vshll.u32 683565275, %v1031
    %v1035 = vshrl.u32 2475754826, %v1032
    %v1036 = vor.u32 %v1034, %v1035
    %v1037 = vshll.u32 2475754826, %v1031
    %v1038 = vshrl.u32 2131351028, %v1032
    %v1039 = vor.u32 %v1037, %v1038
    %v1040 = vshll.u32 2131351028, %v1031
    %v1041 = vshrl.u32 2102212464, %v1032
    %v1042 = vor.u32 %v1040, %v1041
    %v1043 = vshll.u32 2102212464, %v1031
    %v1044 = vshrl.u32 920167782, %v1032
    %v1045 = vor.u32 %v1043, %v1044
    %v1046 = vshll.u32 920167782, %v1031
    %v1047 = vshrl.u32 1326507024, %v1032
    %v1048 = vor.u32 %v1046, %v1047
    %vm1049 = vcmp.lt.s32.totalorder %v1030, 1
    %vm1050 = vcmp.lt.s32.totalorder %v1030, 2
    %vm1051 = vcmp.lt.s32.totalorder %v1030, 3
    %vm1052 = vcmp.lt.s32.totalorder %v1030, 4
    %v1053 = vsel %vm1049, %v1033, %v1036
    %v1054 = vsel %vm1052, %v1042, 2102212464
    %v1055 = vsel %vm1051, %v1039, %v1054
    %v1056 = vsel %vm1050, %v1053, %v1055
    %v1057 = vsel %vm1049, %v1036, %v1039
    %v1058 = vsel %vm1052, %v1045, 920167782
    %v1059 = vsel %vm1051, %v1042, %v1058
    %v1060 = vsel %vm1050, %v1057, %v1059
    %v1061 = vsel %vm1049, %v1039, %v1042
    %v1062 = vsel %vm1052, %v1048, 1326507024
    %v1063 = vsel %vm1051, %v1045, %v1062
    %v1064 = vsel %vm1050, %v1061, %v1063
    %v1065 = vshll.u32 %v1025, 8
    %v1066 = vmul.u32.u64.compose %v1065, %v1064
    %v1067 = vextract.low.u32 %v1066
    %v1068 = vextract.high.u32 %v1066
    %v1069 = vmul.u32.u64.compose %v1065, %v1060
    %v1070 = vextract.low.u32 %v1069
    %v1071 = vextract.high.u32 %v1069
    %v1072 = vmul.u32 %v1065, %v1056
    %v1073 = vadd.s32 %v1068, %v1070
    %vm1074 = vc.u32 %v1068, %v1070
    %v1075 = vadd.s32 %v1071, 1
    %v1076 = vsel %vm1074, %v1075, %v1071
    %v1077 = vadd.s32 %v1072, %v1076
    %v1078 = vadd.s32 %v1077, 536870912
    %v1079 = vshrl.u32 %v1078, 30
    %v1080 = vshll.u32 %v1079, 30
    %v1081 = vsub.s32 %v1077, %v1080
    %vm1082 = vcmp.lt.s32.totalorder %v1081, 0
    %v1083 = vsub.s32 0, %v1081
    %v1084 = vsel %vm1082, %v1083, %v1081
    %v1085 = vclz %v1084
    %v1086 = vsub.s32 %v1085, 2
    %vm1087 = vcmp.gt.s32.totalorder 0, %v1086
    %v1088 = vsel %vm1087, 0, %v1086
    %v1089 = vsub.s32 32, %v1088
    %v1090 = vshll.u32 %v1081, %v1088
    %v1091 = vshrl.u32 %v1073, %v1089
    %v1092 = vor.u32 %v1090, %v1091
    %v1093 = vsub.s32 4294967266, %v1088
    %v1094 = vadd.s32 %v1093, 127
    %v1095 = vshll.u32 %v1094, 23
    %v1096 = vor.u32 4788187, %v1095
    %v1097 = vand.u32 2147483647, %v1096
    %v1099 = vcvt.s32.f32 %v1092
    %v1100 = vmul.f32 %v1099, %v1097
    %v1101 = vxor.u32 %v1100, 2147483648
    %v1102 = vsel %vm1019, %v1101, %v1100
    %v1103 = vsub.s32 4, %v1079
    %v1104 = vsel %vm1019, %v1103, %v1079
    %v1105 = vsel %vm1018, %v912, %v1102
    %v1106 = vsel %vm1018, 0, %v1104
    %v1107 = vcosq.f32.pop %v1105
    %v1108 = vsinq.f32.pop %v1105
    %vm1109 = vweird.f32 %v912
    %v1110 = vadd.s32 %v1106, 3
    %v1111 = vand.u32 %v1110, 3
    %vm1112 = vcmp.lt.s32.totalorder %v1111, 2
    %vm1113 = vcmp.eq.s32.totalorder %v1111, 0
    %v1114 = vxor.u32 %v1108, 2147483648
    %v1115 = vsel %vm1113, %v1107, %v1114
    %vm1116 = vcmp.eq.s32.totalorder %v1111, 2
    %v1117 = vxor.u32 %v1107, 2147483648
    %v1118 = vsel %vm1116, %v1117, %v1108
    %v1119 = vsel %vm1112, %v1115, %v1118
    %v1120 = vsel %vm1109, nan, %v1119
    %v1123 = vcombine.low %v1016, %v1016
    %v1124 = vcombine.low %v1120, %v1120
    %1127 = vst [vmem:[#allocation5 + $0x20] sm:$0xf0] %v1123
    %1128 = vst [vmem:[#allocation5 + $0x28] sm:$0xf0] %v1016
    %1129 = vst [vmem:[#allocation5 + $0x30] sm:$0xf0] %v1124
    %1130 = vst [vmem:[#allocation5 + $0x38] sm:$0xf0] %v1120
    %v1131 = vadd.f32 %v911, 1.5707964
    %v1132 = vadd.f32 %v912, 1.5707964
    %v1133 = vand.u32 2147483647, %v1131
    %vm1134 = vcmp.le.f32.partialorder %v1133, 0.7853982
    %vm1135 = vcmp.lt.s32.totalorder %v1131, 0
    %v1136 = vand.u32 %v1131, 2139095040
    %v1137 = vshrl.u32 %v1136, 23
    %v1138 = vsub.s32 %v1137, 127
    %v1139 = vand.u32 2147483647, %v1131
    %v1140 = vand.u32 %v1139, 8388607
    %v1141 = vor.u32 %v1140, 8388608
    %v1142 = vsub.s32 0, %v1141
    %v1143 = vadd.s32 %v1138, 1
    %vm1144 = vcmp.gt.s32.totalorder %v1143, 0
    %v1145 = vsel %vm1144, %v1143, 0
    %v1146 = vshrl.u32 %v1145, 5
    %v1147 = vand.u32 %v1145, 31
    %v1148 = vsub.s32 32, %v1147
    %v1149 = vshrl.u32 683565275, %v1148
    %v1150 = vshll.u32 683565275, %v1147
    %v1151 = vshrl.u32 2475754826, %v1148
    %v1152 = vor.u32 %v1150, %v1151
    %v1153 = vshll.u32 2475754826, %v1147
    %v1154 = vshrl.u32 2131351028, %v1148
    %v1155 = vor.u32 %v1153, %v1154
    %v1156 = vshll.u32 2131351028, %v1147
    %v1157 = vshrl.u32 2102212464, %v1148
    %v1158 = vor.u32 %v1156, %v1157
    %v1159 = vshll.u32 2102212464, %v1147
    %v1160 = vshrl.u32 920167782, %v1148
    %v1161 = vor.u32 %v1159, %v1160
    %v1162 = vshll.u32 920167782, %v1147
    %v1163 = vshrl.u32 1326507024, %v1148
    %v1164 = vor.u32 %v1162, %v1163
    %vm1165 = vcmp.lt.s32.totalorder %v1146, 1
    %vm1166 = vcmp.lt.s32.totalorder %v1146, 2
    %vm1167 = vcmp.lt.s32.totalorder %v1146, 3
    %vm1168 = vcmp.lt.s32.totalorder %v1146, 4
    %v1169 = vsel %vm1165, %v1149, %v1152
    %v1170 = vsel %vm1168, %v1158, 2102212464
    %v1171 = vsel %vm1167, %v1155, %v1170
    %v1172 = vsel %vm1166, %v1169, %v1171
    %v1173 = vsel %vm1165, %v1152, %v1155
    %v1174 = vsel %vm1168, %v1161, 920167782
    %v1175 = vsel %vm1167, %v1158, %v1174
    %v1176 = vsel %vm1166, %v1173, %v1175
    %v1177 = vsel %vm1165, %v1155, %v1158
    %v1178 = vsel %vm1168, %v1164, 1326507024
    %v1179 = vsel %vm1167, %v1161, %v1178
    %v1180 = vsel %vm1166, %v1177, %v1179
    %v1181 = vshll.u32 %v1141, 8
    %v1182 = vmul.u32.u64.compose %v1181, %v1180
    %v1183 = vextract.low.u32 %v1182
    %v1184 = vextract.high.u32 %v1182
    %v1185 = vmul.u32.u64.compose %v1181, %v1176
    %v1186 = vextract.low.u32 %v1185
    %v1187 = vextract.high.u32 %v1185
    %v1188 = vmul.u32 %v1181, %v1172
    %v1189 = vadd.s32 %v1184, %v1186
    %vm1190 = vc.u32 %v1184, %v1186
    %v1191 = vadd.s32 %v1187, 1
    %v1192 = vsel %vm1190, %v1191, %v1187
    %v1193 = vadd.s32 %v1188, %v1192
    %v1194 = vadd.s32 %v1193, 536870912
    %v1195 = vshrl.u32 %v1194, 30
    %v1196 = vshll.u32 %v1195, 30
    %v1197 = vsub.s32 %v1193, %v1196
    %vm1198 = vcmp.lt.s32.totalorder %v1197, 0
    %v1199 = vsub.s32 0, %v1197
    %v1200 = vsel %vm1198, %v1199, %v1197
    %v1201 = vclz %v1200
    %v1202 = vsub.s32 %v1201, 2
    %vm1203 = vcmp.gt.s32.totalorder 0, %v1202
    %v1204 = vsel %vm1203, 0, %v1202
    %v1205 = vsub.s32 32, %v1204
    %v1206 = vshll.u32 %v1197, %v1204
    %v1207 = vshrl.u32 %v1189, %v1205
    %v1208 = vor.u32 %v1206, %v1207
    %v1209 = vsub.s32 4294967266, %v1204
    %v1210 = vadd.s32 %v1209, 127
    %v1211 = vshll.u32 %v1210, 23
    %v1212 = vor.u32 4788187, %v1211
    %v1213 = vand.u32 2147483647, %v1212
    %v1215 = vcvt.s32.f32 %v1208
    %v1216 = vmul.f32 %v1215, %v1213
    %v1217 = vxor.u32 %v1216, 2147483648
    %v1218 = vsel %vm1135, %v1217, %v1216
    %v1219 = vsub.s32 4, %v1195
    %v1220 = vsel %vm1135, %v1219, %v1195
    %v1221 = vsel %vm1134, %v1131, %v1218
    %v1222 = vsel %vm1134, 0, %v1220
    %v1223 = vcosq.f32.pop %v1221
    %v1224 = vsinq.f32.pop %v1221
    %vm1225 = vweird.f32 %v1131
    %v1226 = vadd.s32 %v1222, 3
    %v1227 = vand.u32 %v1226, 3
    %vm1228 = vcmp.lt.s32.totalorder %v1227, 2
    %vm1229 = vcmp.eq.s32.totalorder %v1227, 0
    %v1230 = vxor.u32 %v1224, 2147483648
    %v1231 = vsel %vm1229, %v1223, %v1230
    %vm1232 = vcmp.eq.s32.totalorder %v1227, 2
    %v1233 = vxor.u32 %v1223, 2147483648
    %v1234 = vsel %vm1232, %v1233, %v1224
    %v1235 = vsel %vm1228, %v1231, %v1234
    %v1236 = vsel %vm1225, nan, %v1235
    %v1237 = vand.u32 2147483647, %v1132
    %vm1238 = vcmp.le.f32.partialorder %v1237, 0.7853982
    %vm1239 = vcmp.lt.s32.totalorder %v1132, 0
    %v1240 = vand.u32 %v1132, 2139095040
    %v1241 = vshrl.u32 %v1240, 23
    %v1242 = vsub.s32 %v1241, 127
    %v1243 = vand.u32 2147483647, %v1132
    %v1244 = vand.u32 %v1243, 8388607
    %v1245 = vor.u32 %v1244, 8388608
    %v1246 = vsub.s32 0, %v1245
    %v1247 = vadd.s32 %v1242, 1
    %vm1248 = vcmp.gt.s32.totalorder %v1247, 0
    %v1249 = vsel %vm1248, %v1247, 0
    %v1250 = vshrl.u32 %v1249, 5
    %v1251 = vand.u32 %v1249, 31
    %v1252 = vsub.s32 32, %v1251
    %v1253 = vshrl.u32 683565275, %v1252
    %v1254 = vshll.u32 683565275, %v1251
    %v1255 = vshrl.u32 2475754826, %v1252
    %v1256 = vor.u32 %v1254, %v1255
    %v1257 = vshll.u32 2475754826, %v1251
    %v1258 = vshrl.u32 2131351028, %v1252
    %v1259 = vor.u32 %v1257, %v1258
    %v1260 = vshll.u32 2131351028, %v1251
    %v1261 = vshrl.u32 2102212464, %v1252
    %v1262 = vor.u32 %v1260, %v1261
    %v1263 = vshll.u32 2102212464, %v1251
    %v1264 = vshrl.u32 920167782, %v1252
    %v1265 = vor.u32 %v1263, %v1264
    %v1266 = vshll.u32 920167782, %v1251
    %v1267 = vshrl.u32 1326507024, %v1252
    %v1268 = vor.u32 %v1266, %v1267
    %vm1269 = vcmp.lt.s32.totalorder %v1250, 1
    %vm1270 = vcmp.lt.s32.totalorder %v1250, 2
    %vm1271 = vcmp.lt.s32.totalorder %v1250, 3
    %vm1272 = vcmp.lt.s32.totalorder %v1250, 4
    %v1273 = vsel %vm1269, %v1253, %v1256
    %v1274 = vsel %vm1272, %v1262, 2102212464
    %v1275 = vsel %vm1271, %v1259, %v1274
    %v1276 = vsel %vm1270, %v1273, %v1275
    %v1277 = vsel %vm1269, %v1256, %v1259
    %v1278 = vsel %vm1272, %v1265, 920167782
    %v1279 = vsel %vm1271, %v1262, %v1278
    %v1280 = vsel %vm1270, %v1277, %v1279
    %v1281 = vsel %vm1269, %v1259, %v1262
    %v1282 = vsel %vm1272, %v1268, 1326507024
    %v1283 = vsel %vm1271, %v1265, %v1282
    %v1284 = vsel %vm1270, %v1281, %v1283
    %v1285 = vshll.u32 %v1245, 8
    %v1286 = vmul.u32.u64.compose %v1285, %v1284
    %v1287 = vextract.low.u32 %v1286
    %v1288 = vextract.high.u32 %v1286
    %v1289 = vmul.u32.u64.compose %v1285, %v1280
    %v1290 = vextract.low.u32 %v1289
    %v1291 = vextract.high.u32 %v1289
    %v1292 = vmul.u32 %v1285, %v1276
    %v1293 = vadd.s32 %v1288, %v1290
    %vm1294 = vc.u32 %v1288, %v1290
    %v1295 = vadd.s32 %v1291, 1
    %v1296 = vsel %vm1294, %v1295, %v1291
    %v1297 = vadd.s32 %v1292, %v1296
    %v1298 = vadd.s32 %v1297, 536870912
    %v1299 = vshrl.u32 %v1298, 30
    %v1300 = vshll.u32 %v1299, 30
    %v1301 = vsub.s32 %v1297, %v1300
    %vm1302 = vcmp.lt.s32.totalorder %v1301, 0
    %v1303 = vsub.s32 0, %v1301
    %v1304 = vsel %vm1302, %v1303, %v1301
    %v1305 = vclz %v1304
    %v1306 = vsub.s32 %v1305, 2
    %vm1307 = vcmp.gt.s32.totalorder 0, %v1306
    %v1308 = vsel %vm1307, 0, %v1306
    %v1309 = vsub.s32 32, %v1308
    %v1310 = vshll.u32 %v1301, %v1308
    %v1311 = vshrl.u32 %v1293, %v1309
    %v1312 = vor.u32 %v1310, %v1311
    %v1313 = vsub.s32 4294967266, %v1308
    %v1314 = vadd.s32 %v1313, 127
    %v1315 = vshll.u32 %v1314, 23
    %v1316 = vor.u32 4788187, %v1315
    %v1317 = vand.u32 2147483647, %v1316
    %v1319 = vcvt.s32.f32 %v1312
    %v1320 = vmul.f32 %v1319, %v1317
    %v1321 = vxor.u32 %v1320, 2147483648
    %v1322 = vsel %vm1239, %v1321, %v1320
    %v1323 = vsub.s32 4, %v1299
    %v1324 = vsel %vm1239, %v1323, %v1299
    %v1325 = vsel %vm1238, %v1132, %v1322
    %v1326 = vsel %vm1238, 0, %v1324
    %v1327 = vcosq.f32.pop %v1325
    %v1328 = vsinq.f32.pop %v1325
    %vm1329 = vweird.f32 %v1132
    %v1330 = vadd.s32 %v1326, 3
    %v1331 = vand.u32 %v1330, 3
    %vm1332 = vcmp.lt.s32.totalorder %v1331, 2
    %vm1333 = vcmp.eq.s32.totalorder %v1331, 0
    %v1334 = vxor.u32 %v1328, 2147483648
    %v1335 = vsel %vm1333, %v1327, %v1334
    %vm1336 = vcmp.eq.s32.totalorder %v1331, 2
    %v1337 = vxor.u32 %v1327, 2147483648
    %v1338 = vsel %vm1336, %v1337, %v1328
    %v1339 = vsel %vm1332, %v1335, %v1338
    %v1340 = vsel %vm1329, nan, %v1339
    %v1343 = vcombine.low %v1236, %v1236
    %v1344 = vcombine.low %v1340, %v1340
    %1347 = vst [vmem:[#allocation5 + $0x60] sm:$0xf0] %v1343
    %1348 = vst [vmem:[#allocation5 + $0x68] sm:$0xf0] %v1236
    %1349 = vst [vmem:[#allocation5 + $0x70] sm:$0xf0] %v1344
    %1350 = vst [vmem:[#allocation5 + $0x78] sm:$0xf0] %v1340
    %v1351 = vmul.f32 %v21, 8.0
    %v1352 = vmul.f32 %v22, 8.0
    %v1353 = vand.u32 2147483647, %v1351
    %vm1354 = vcmp.le.f32.partialorder %v1353, 0.7853982
    %vm1355 = vcmp.lt.s32.totalorder %v1351, 0
    %v1356 = vand.u32 %v1351, 2139095040
    %v1357 = vshrl.u32 %v1356, 23
    %v1358 = vsub.s32 %v1357, 127
    %v1359 = vand.u32 2147483647, %v1351
    %v1360 = vand.u32 %v1359, 8388607
    %v1361 = vor.u32 %v1360, 8388608
    %v1362 = vsub.s32 0, %v1361
    %v1363 = vadd.s32 %v1358, 1
    %vm1364 = vcmp.gt.s32.totalorder %v1363, 0
    %v1365 = vsel %vm1364, %v1363, 0
    %v1366 = vshrl.u32 %v1365, 5
    %v1367 = vand.u32 %v1365, 31
    %v1368 = vsub.s32 32, %v1367
    %v1369 = vshrl.u32 683565275, %v1368
    %v1370 = vshll.u32 683565275, %v1367
    %v1371 = vshrl.u32 2475754826, %v1368
    %v1372 = vor.u32 %v1370, %v1371
    %v1373 = vshll.u32 2475754826, %v1367
    %v1374 = vshrl.u32 2131351028, %v1368
    %v1375 = vor.u32 %v1373, %v1374
    %v1376 = vshll.u32 2131351028, %v1367
    %v1377 = vshrl.u32 2102212464, %v1368
    %v1378 = vor.u32 %v1376, %v1377
    %v1379 = vshll.u32 2102212464, %v1367
    %v1380 = vshrl.u32 920167782, %v1368
    %v1381 = vor.u32 %v1379, %v1380
    %v1382 = vshll.u32 920167782, %v1367
    %v1383 = vshrl.u32 1326507024, %v1368
    %v1384 = vor.u32 %v1382, %v1383
    %vm1385 = vcmp.lt.s32.totalorder %v1366, 1
    %vm1386 = vcmp.lt.s32.totalorder %v1366, 2
    %vm1387 = vcmp.lt.s32.totalorder %v1366, 3
    %vm1388 = vcmp.lt.s32.totalorder %v1366, 4
    %v1389 = vsel %vm1385, %v1369, %v1372
    %v1390 = vsel %vm1388, %v1378, 2102212464
    %v1391 = vsel %vm1387, %v1375, %v1390
    %v1392 = vsel %vm1386, %v1389, %v1391
    %v1393 = vsel %vm1385, %v1372, %v1375
    %v1394 = vsel %vm1388, %v1381, 920167782
    %v1395 = vsel %vm1387, %v1378, %v1394
    %v1396 = vsel %vm1386, %v1393, %v1395
    %v1397 = vsel %vm1385, %v1375, %v1378
    %v1398 = vsel %vm1388, %v1384, 1326507024
    %v1399 = vsel %vm1387, %v1381, %v1398
    %v1400 = vsel %vm1386, %v1397, %v1399
    %v1401 = vshll.u32 %v1361, 8
    %v1402 = vmul.u32.u64.compose %v1401, %v1400
    %v1403 = vextract.low.u32 %v1402
    %v1404 = vextract.high.u32 %v1402
    %v1405 = vmul.u32.u64.compose %v1401, %v1396
    %v1406 = vextract.low.u32 %v1405
    %v1407 = vextract.high.u32 %v1405
    %v1408 = vmul.u32 %v1401, %v1392
    %v1409 = vadd.s32 %v1404, %v1406
    %vm1410 = vc.u32 %v1404, %v1406
    %v1411 = vadd.s32 %v1407, 1
    %v1412 = vsel %vm1410, %v1411, %v1407
    %v1413 = vadd.s32 %v1408, %v1412
    %v1414 = vadd.s32 %v1413, 536870912
    %v1415 = vshrl.u32 %v1414, 30
    %v1416 = vshll.u32 %v1415, 30
    %v1417 = vsub.s32 %v1413, %v1416
    %vm1418 = vcmp.lt.s32.totalorder %v1417, 0
    %v1419 = vsub.s32 0, %v1417
    %v1420 = vsel %vm1418, %v1419, %v1417
    %v1421 = vclz %v1420
    %v1422 = vsub.s32 %v1421, 2
    %vm1423 = vcmp.gt.s32.totalorder 0, %v1422
    %v1424 = vsel %vm1423, 0, %v1422
    %v1425 = vsub.s32 32, %v1424
    %v1426 = vshll.u32 %v1417, %v1424
    %v1427 = vshrl.u32 %v1409, %v1425
    %v1428 = vor.u32 %v1426, %v1427
    %v1429 = vsub.s32 4294967266, %v1424
    %v1430 = vadd.s32 %v1429, 127
    %v1431 = vshll.u32 %v1430, 23
    %v1432 = vor.u32 4788187, %v1431
    %v1433 = vand.u32 2147483647, %v1432
    %v1435 = vcvt.s32.f32 %v1428
    %v1436 = vmul.f32 %v1435, %v1433
    %v1437 = vxor.u32 %v1436, 2147483648
    %v1438 = vsel %vm1355, %v1437, %v1436
    %v1439 = vsub.s32 4, %v1415
    %v1440 = vsel %vm1355, %v1439, %v1415
    %v1441 = vsel %vm1354, %v1351, %v1438
    %v1442 = vsel %vm1354, 0, %v1440
    %v1443 = vcosq.f32.pop %v1441
    %v1444 = vsinq.f32.pop %v1441
    %vm1445 = vweird.f32 %v1351
    %v1446 = vadd.s32 %v1442, 3
    %v1447 = vand.u32 %v1446, 3
    %vm1448 = vcmp.lt.s32.totalorder %v1447, 2
    %vm1449 = vcmp.eq.s32.totalorder %v1447, 0
    %v1450 = vxor.u32 %v1444, 2147483648
    %v1451 = vsel %vm1449, %v1443, %v1450
    %vm1452 = vcmp.eq.s32.totalorder %v1447, 2
    %v1453 = vxor.u32 %v1443, 2147483648
    %v1454 = vsel %vm1452, %v1453, %v1444
    %v1455 = vsel %vm1448, %v1451, %v1454
    %v1456 = vsel %vm1445, nan, %v1455
    %v1457 = vand.u32 2147483647, %v1352
    %vm1458 = vcmp.le.f32.partialorder %v1457, 0.7853982
    %vm1459 = vcmp.lt.s32.totalorder %v1352, 0
    %v1460 = vand.u32 %v1352, 2139095040
    %v1461 = vshrl.u32 %v1460, 23
    %v1462 = vsub.s32 %v1461, 127
    %v1463 = vand.u32 2147483647, %v1352
    %v1464 = vand.u32 %v1463, 8388607
    %v1465 = vor.u32 %v1464, 8388608
    %v1466 = vsub.s32 0, %v1465
    %v1467 = vadd.s32 %v1462, 1
    %vm1468 = vcmp.gt.s32.totalorder %v1467, 0
    %v1469 = vsel %vm1468, %v1467, 0
    %v1470 = vshrl.u32 %v1469, 5
    %v1471 = vand.u32 %v1469, 31
    %v1472 = vsub.s32 32, %v1471
    %v1473 = vshrl.u32 683565275, %v1472
    %v1474 = vshll.u32 683565275, %v1471
    %v1475 = vshrl.u32 2475754826, %v1472
    %v1476 = vor.u32 %v1474, %v1475
    %v1477 = vshll.u32 2475754826, %v1471
    %v1478 = vshrl.u32 2131351028, %v1472
    %v1479 = vor.u32 %v1477, %v1478
    %v1480 = vshll.u32 2131351028, %v1471
    %v1481 = vshrl.u32 2102212464, %v1472
    %v1482 = vor.u32 %v1480, %v1481
    %v1483 = vshll.u32 2102212464, %v1471
    %v1484 = vshrl.u32 920167782, %v1472
    %v1485 = vor.u32 %v1483, %v1484
    %v1486 = vshll.u32 920167782, %v1471
    %v1487 = vshrl.u32 1326507024, %v1472
    %v1488 = vor.u32 %v1486, %v1487
    %vm1489 = vcmp.lt.s32.totalorder %v1470, 1
    %vm1490 = vcmp.lt.s32.totalorder %v1470, 2
    %vm1491 = vcmp.lt.s32.totalorder %v1470, 3
    %vm1492 = vcmp.lt.s32.totalorder %v1470, 4
    %v1493 = vsel %vm1489, %v1473, %v1476
    %v1494 = vsel %vm1492, %v1482, 2102212464
    %v1495 = vsel %vm1491, %v1479, %v1494
    %v1496 = vsel %vm1490, %v1493, %v1495
    %v1497 = vsel %vm1489, %v1476, %v1479
    %v1498 = vsel %vm1492, %v1485, 920167782
    %v1499 = vsel %vm1491, %v1482, %v1498
    %v1500 = vsel %vm1490, %v1497, %v1499
    %v1501 = vsel %vm1489, %v1479, %v1482
    %v1502 = vsel %vm1492, %v1488, 1326507024
    %v1503 = vsel %vm1491, %v1485, %v1502
    %v1504 = vsel %vm1490, %v1501, %v1503
    %v1505 = vshll.u32 %v1465, 8
    %v1506 = vmul.u32.u64.compose %v1505, %v1504
    %v1507 = vextract.low.u32 %v1506
    %v1508 = vextract.high.u32 %v1506
    %v1509 = vmul.u32.u64.compose %v1505, %v1500
    %v1510 = vextract.low.u32 %v1509
    %v1511 = vextract.high.u32 %v1509
    %v1512 = vmul.u32 %v1505, %v1496
    %v1513 = vadd.s32 %v1508, %v1510
    %vm1514 = vc.u32 %v1508, %v1510
    %v1515 = vadd.s32 %v1511, 1
    %v1516 = vsel %vm1514, %v1515, %v1511
    %v1517 = vadd.s32 %v1512, %v1516
    %v1518 = vadd.s32 %v1517, 536870912
    %v1519 = vshrl.u32 %v1518, 30
    %v1520 = vshll.u32 %v1519, 30
    %v1521 = vsub.s32 %v1517, %v1520
    %vm1522 = vcmp.lt.s32.totalorder %v1521, 0
    %v1523 = vsub.s32 0, %v1521
    %v1524 = vsel %vm1522, %v1523, %v1521
    %v1525 = vclz %v1524
    %v1526 = vsub.s32 %v1525, 2
    %vm1527 = vcmp.gt.s32.totalorder 0, %v1526
    %v1528 = vsel %vm1527, 0, %v1526
    %v1529 = vsub.s32 32, %v1528
    %v1530 = vshll.u32 %v1521, %v1528
    %v1531 = vshrl.u32 %v1513, %v1529
    %v1532 = vor.u32 %v1530, %v1531
    %v1533 = vsub.s32 4294967266, %v1528
    %v1534 = vadd.s32 %v1533, 127
    %v1535 = vshll.u32 %v1534, 23
    %v1536 = vor.u32 4788187, %v1535
    %v1537 = vand.u32 2147483647, %v1536
    %v1539 = vcvt.s32.f32 %v1532
    %v1540 = vmul.f32 %v1539, %v1537
    %v1541 = vxor.u32 %v1540, 2147483648
    %v1542 = vsel %vm1459, %v1541, %v1540
    %v1543 = vsub.s32 4, %v1519
    %v1544 = vsel %vm1459, %v1543, %v1519
    %v1545 = vsel %vm1458, %v1352, %v1542
    %v1546 = vsel %vm1458, 0, %v1544
    %v1547 = vcosq.f32.pop %v1545
    %v1548 = vsinq.f32.pop %v1545
    %vm1549 = vweird.f32 %v1352
    %v1550 = vadd.s32 %v1546, 3
    %v1551 = vand.u32 %v1550, 3
    %vm1552 = vcmp.lt.s32.totalorder %v1551, 2
    %vm1553 = vcmp.eq.s32.totalorder %v1551, 0
    %v1554 = vxor.u32 %v1548, 2147483648
    %v1555 = vsel %vm1553, %v1547, %v1554
    %vm1556 = vcmp.eq.s32.totalorder %v1551, 2
    %v1557 = vxor.u32 %v1547, 2147483648
    %v1558 = vsel %vm1556, %v1557, %v1548
    %v1559 = vsel %vm1552, %v1555, %v1558
    %v1560 = vsel %vm1549, nan, %v1559
    %v1563 = vcombine.high %v1456, %v1456
    %v1564 = vcombine.high %v1560, %v1560
    %1567 = vst [vmem:[#allocation5 + $0x40] sm:$0xf] %v1456
    %1568 = vst [vmem:[#allocation5 + $0x48] sm:$0xf] %v1563
    %1569 = vst [vmem:[#allocation5 + $0x50] sm:$0xf] %v1560
    %1570 = vst [vmem:[#allocation5 + $0x58] sm:$0xf] %v1564
    %v1571 = vadd.f32 %v1351, 1.5707964
    %v1572 = vadd.f32 %v1352, 1.5707964
    %v1573 = vand.u32 2147483647, %v1571
    %vm1574 = vcmp.le.f32.partialorder %v1573, 0.7853982
    %vm1575 = vcmp.lt.s32.totalorder %v1571, 0
    %v1576 = vand.u32 %v1571, 2139095040
    %v1577 = vshrl.u32 %v1576, 23
    %v1578 = vsub.s32 %v1577, 127
    %v1579 = vand.u32 2147483647, %v1571
    %v1580 = vand.u32 %v1579, 8388607
    %v1581 = vor.u32 %v1580, 8388608
    %v1582 = vsub.s32 0, %v1581
    %v1583 = vadd.s32 %v1578, 1
    %vm1584 = vcmp.gt.s32.totalorder %v1583, 0
    %v1585 = vsel %vm1584, %v1583, 0
    %v1586 = vshrl.u32 %v1585, 5
    %v1587 = vand.u32 %v1585, 31
    %v1588 = vsub.s32 32, %v1587
    %v1589 = vshrl.u32 683565275, %v1588
    %v1590 = vshll.u32 683565275, %v1587
    %v1591 = vshrl.u32 2475754826, %v1588
    %v1592 = vor.u32 %v1590, %v1591
    %v1593 = vshll.u32 2475754826, %v1587
    %v1594 = vshrl.u32 2131351028, %v1588
    %v1595 = vor.u32 %v1593, %v1594
    %v1596 = vshll.u32 2131351028, %v1587
    %v1597 = vshrl.u32 2102212464, %v1588
    %v1598 = vor.u32 %v1596, %v1597
    %v1599 = vshll.u32 2102212464, %v1587
    %v1600 = vshrl.u32 920167782, %v1588
    %v1601 = vor.u32 %v1599, %v1600
    %v1602 = vshll.u32 920167782, %v1587
    %v1603 = vshrl.u32 1326507024, %v1588
    %v1604 = vor.u32 %v1602, %v1603
    %vm1605 = vcmp.lt.s32.totalorder %v1586, 1
    %vm1606 = vcmp.lt.s32.totalorder %v1586, 2
    %vm1607 = vcmp.lt.s32.totalorder %v1586, 3
    %vm1608 = vcmp.lt.s32.totalorder %v1586, 4
    %v1609 = vsel %vm1605, %v1589, %v1592
    %v1610 = vsel %vm1608, %v1598, 2102212464
    %v1611 = vsel %vm1607, %v1595, %v1610
    %v1612 = vsel %vm1606, %v1609, %v1611
    %v1613 = vsel %vm1605, %v1592, %v1595
    %v1614 = vsel %vm1608, %v1601, 920167782
    %v1615 = vsel %vm1607, %v1598, %v1614
    %v1616 = vsel %vm1606, %v1613, %v1615
    %v1617 = vsel %vm1605, %v1595, %v1598
    %v1618 = vsel %vm1608, %v1604, 1326507024
    %v1619 = vsel %vm1607, %v1601, %v1618
    %v1620 = vsel %vm1606, %v1617, %v1619
    %v1621 = vshll.u32 %v1581, 8
    %v1622 = vmul.u32.u64.compose %v1621, %v1620
    %v1623 = vextract.low.u32 %v1622
    %v1624 = vextract.high.u32 %v1622
    %v1625 = vmul.u32.u64.compose %v1621, %v1616
    %v1626 = vextract.low.u32 %v1625
    %v1627 = vextract.high.u32 %v1625
    %v1628 = vmul.u32 %v1621, %v1612
    %v1629 = vadd.s32 %v1624, %v1626
    %vm1630 = vc.u32 %v1624, %v1626
    %v1631 = vadd.s32 %v1627, 1
    %v1632 = vsel %vm1630, %v1631, %v1627
    %v1633 = vadd.s32 %v1628, %v1632
    %v1634 = vadd.s32 %v1633, 536870912
    %v1635 = vshrl.u32 %v1634, 30
    %v1636 = vshll.u32 %v1635, 30
    %v1637 = vsub.s32 %v1633, %v1636
    %vm1638 = vcmp.lt.s32.totalorder %v1637, 0
    %v1639 = vsub.s32 0, %v1637
    %v1640 = vsel %vm1638, %v1639, %v1637
    %v1641 = vclz %v1640
    %v1642 = vsub.s32 %v1641, 2
    %vm1643 = vcmp.gt.s32.totalorder 0, %v1642
    %v1644 = vsel %vm1643, 0, %v1642
    %v1645 = vsub.s32 32, %v1644
    %v1646 = vshll.u32 %v1637, %v1644
    %v1647 = vshrl.u32 %v1629, %v1645
    %v1648 = vor.u32 %v1646, %v1647
    %v1649 = vsub.s32 4294967266, %v1644
    %v1650 = vadd.s32 %v1649, 127
    %v1651 = vshll.u32 %v1650, 23
    %v1652 = vor.u32 4788187, %v1651
    %v1653 = vand.u32 2147483647, %v1652
    %v1655 = vcvt.s32.f32 %v1648
    %v1656 = vmul.f32 %v1655, %v1653
    %v1657 = vxor.u32 %v1656, 2147483648
    %v1658 = vsel %vm1575, %v1657, %v1656
    %v1659 = vsub.s32 4, %v1635
    %v1660 = vsel %vm1575, %v1659, %v1635
    %v1661 = vsel %vm1574, %v1571, %v1658
    %v1662 = vsel %vm1574, 0, %v1660
    %v1663 = vcosq.f32.pop %v1661
    %v1664 = vsinq.f32.pop %v1661
    %vm1665 = vweird.f32 %v1571
    %v1666 = vadd.s32 %v1662, 3
    %v1667 = vand.u32 %v1666, 3
    %vm1668 = vcmp.lt.s32.totalorder %v1667, 2
    %vm1669 = vcmp.eq.s32.totalorder %v1667, 0
    %v1670 = vxor.u32 %v1664, 2147483648
    %v1671 = vsel %vm1669, %v1663, %v1670
    %vm1672 = vcmp.eq.s32.totalorder %v1667, 2
    %v1673 = vxor.u32 %v1663, 2147483648
    %v1674 = vsel %vm1672, %v1673, %v1664
    %v1675 = vsel %vm1668, %v1671, %v1674
    %v1676 = vsel %vm1665, nan, %v1675
    %v1677 = vand.u32 2147483647, %v1572
    %vm1678 = vcmp.le.f32.partialorder %v1677, 0.7853982
    %vm1679 = vcmp.lt.s32.totalorder %v1572, 0
    %v1680 = vand.u32 %v1572, 2139095040
    %v1681 = vshrl.u32 %v1680, 23
    %v1682 = vsub.s32 %v1681, 127
    %v1683 = vand.u32 2147483647, %v1572
    %v1684 = vand.u32 %v1683, 8388607
    %v1685 = vor.u32 %v1684, 8388608
    %v1686 = vsub.s32 0, %v1685
    %v1687 = vadd.s32 %v1682, 1
    %vm1688 = vcmp.gt.s32.totalorder %v1687, 0
    %v1689 = vsel %vm1688, %v1687, 0
    %v1690 = vshrl.u32 %v1689, 5
    %v1691 = vand.u32 %v1689, 31
    %v1692 = vsub.s32 32, %v1691
    %v1693 = vshrl.u32 683565275, %v1692
    %v1694 = vshll.u32 683565275, %v1691
    %v1695 = vshrl.u32 2475754826, %v1692
    %v1696 = vor.u32 %v1694, %v1695
    %v1697 = vshll.u32 2475754826, %v1691
    %v1698 = vshrl.u32 2131351028, %v1692
    %v1699 = vor.u32 %v1697, %v1698
    %v1700 = vshll.u32 2131351028, %v1691
    %v1701 = vshrl.u32 2102212464, %v1692
    %v1702 = vor.u32 %v1700, %v1701
    %v1703 = vshll.u32 2102212464, %v1691
    %v1704 = vshrl.u32 920167782, %v1692
    %v1705 = vor.u32 %v1703, %v1704
    %v1706 = vshll.u32 920167782, %v1691
    %v1707 = vshrl.u32 1326507024, %v1692
    %v1708 = vor.u32 %v1706, %v1707
    %vm1709 = vcmp.lt.s32.totalorder %v1690, 1
    %vm1710 = vcmp.lt.s32.totalorder %v1690, 2
    %vm1711 = vcmp.lt.s32.totalorder %v1690, 3
    %vm1712 = vcmp.lt.s32.totalorder %v1690, 4
    %v1713 = vsel %vm1709, %v1693, %v1696
    %v1714 = vsel %vm1712, %v1702, 2102212464
    %v1715 = vsel %vm1711, %v1699, %v1714
    %v1716 = vsel %vm1710, %v1713, %v1715
    %v1717 = vsel %vm1709, %v1696, %v1699
    %v1718 = vsel %vm1712, %v1705, 920167782
    %v1719 = vsel %vm1711, %v1702, %v1718
    %v1720 = vsel %vm1710, %v1717, %v1719
    %v1721 = vsel %vm1709, %v1699, %v1702
    %v1722 = vsel %vm1712, %v1708, 1326507024
    %v1723 = vsel %vm1711, %v1705, %v1722
    %v1724 = vsel %vm1710, %v1721, %v1723
    %v1725 = vshll.u32 %v1685, 8
    %v1726 = vmul.u32.u64.compose %v1725, %v1724
    %v1727 = vextract.low.u32 %v1726
    %v1728 = vextract.high.u32 %v1726
    %v1729 = vmul.u32.u64.compose %v1725, %v1720
    %v1730 = vextract.low.u32 %v1729
    %v1731 = vextract.high.u32 %v1729
    %v1732 = vmul.u32 %v1725, %v1716
    %v1733 = vadd.s32 %v1728, %v1730
    %vm1734 = vc.u32 %v1728, %v1730
    %v1735 = vadd.s32 %v1731, 1
    %v1736 = vsel %vm1734, %v1735, %v1731
    %v1737 = vadd.s32 %v1732, %v1736
    %v1738 = vadd.s32 %v1737, 536870912
    %v1739 = vshrl.u32 %v1738, 30
    %v1740 = vshll.u32 %v1739, 30
    %v1741 = vsub.s32 %v1737, %v1740
    %vm1742 = vcmp.lt.s32.totalorder %v1741, 0
    %v1743 = vsub.s32 0, %v1741
    %v1744 = vsel %vm1742, %v1743, %v1741
    %v1745 = vclz %v1744
    %v1746 = vsub.s32 %v1745, 2
    %vm1747 = vcmp.gt.s32.totalorder 0, %v1746
    %v1748 = vsel %vm1747, 0, %v1746
    %v1749 = vsub.s32 32, %v1748
    %v1750 = vshll.u32 %v1741, %v1748
    %v1751 = vshrl.u32 %v1733, %v1749
    %v1752 = vor.u32 %v1750, %v1751
    %v1753 = vsub.s32 4294967266, %v1748
    %v1754 = vadd.s32 %v1753, 127
    %v1755 = vshll.u32 %v1754, 23
    %v1756 = vor.u32 4788187, %v1755
    %v1757 = vand.u32 2147483647, %v1756
    %v1759 = vcvt.s32.f32 %v1752
    %v1760 = vmul.f32 %v1759, %v1757
    %v1761 = vxor.u32 %v1760, 2147483648
    %v1762 = vsel %vm1679, %v1761, %v1760
    %v1763 = vsub.s32 4, %v1739
    %v1764 = vsel %vm1679, %v1763, %v1739
    %v1765 = vsel %vm1678, %v1572, %v1762
    %v1766 = vsel %vm1678, 0, %v1764
    %v1767 = vcosq.f32.pop %v1765
    %v1768 = vsinq.f32.pop %v1765
    %vm1769 = vweird.f32 %v1572
    %v1770 = vadd.s32 %v1766, 3
    %v1771 = vand.u32 %v1770, 3
    %vm1772 = vcmp.lt.s32.totalorder %v1771, 2
    %vm1773 = vcmp.eq.s32.totalorder %v1771, 0
    %v1774 = vxor.u32 %v1768, 2147483648
    %v1775 = vsel %vm1773, %v1767, %v1774
    %vm1776 = vcmp.eq.s32.totalorder %v1771, 2
    %v1777 = vxor.u32 %v1767, 2147483648
    %v1778 = vsel %vm1776, %v1777, %v1768
    %v1779 = vsel %vm1772, %v1775, %v1778
    %v1780 = vsel %vm1769, nan, %v1779
    %v1783 = vcombine.high %v1676, %v1676
    %v1784 = vcombine.high %v1780, %v1780
    %1787 = vst [vmem:[#allocation5 + $0x80] sm:$0xf] %v1676
    %1788 = vst [vmem:[#allocation5 + $0x88] sm:$0xf] %v1783
    %1789 = vst [vmem:[#allocation5 + $0x90] sm:$0xf] %v1780
    %1790 = vst [vmem:[#allocation5 + $0x98] sm:$0xf] %v1784
    // Predicated region
    $region10: #{tpu_custom_call.1} parent=1 // pred_check
      _
    $region11: #{tpu_custom_call.1} parent=1 // pred_check_branch
      %1792 = sbr.rel (0) target = $region13
    $region12: #{tpu_custom_call.1} parent=1 // pred_region
      %s1794 = ssub.s32 2560, 2560
      %1795 = vsyncadd [#allocation4], %s1794
      %s1796 = sshll.u32 [#allocation5], 4
      %s1797 = int_to_ptr.vmem [resolvable:$true] %s1796
      %1802 = dma.vmem_to_hbm [thread:$0]  %s1797, 2560, %s1, [#allocation4], 512, 512, 32
    $region13: #{tpu_custom_call.1} parent=1 // pred_fallthru
      _
    // Predicated region
    $region14: #{tpu_custom_call.1} parent=1 // pred_check
      _
    $region15: #{tpu_custom_call.1} parent=1 // pred_check_branch
      %1804 = sbr.rel (0) target = $region17
    $region16: #{tpu_custom_call.1} parent=1 // pred_region
      %1805 = dma.done [#allocation4], 2560
    $region17: #{tpu_custom_call.1} parent=1 // pred_fallthru
      _
    %1806 = vsyncpa [#allocation3], 1
    %1807 = vsyncpa [#allocation4], 1

</llo_original>
